<compile_context>
chip_gen: v7x
topology: tpu7x:2x2x1
jax: 0.10.0
libtpu: 0.0.40
codegen_flags: <defaults>
</compile_context>

<pallas_src>
import jax
import jax.numpy as jnp
from jax import lax
from jax.experimental import pallas as pl
from jax.experimental.pallas import tpu as pltpu

BN_EPS = 1e-3       # scVI FCLayers: nn.BatchNorm1d(n_out, momentum=0.01, eps=0.001)
NEG_BIG = -1e30     # folded bias for padded gene columns (softmax mass -> 0)


def _round_up(x, m):
    return (x + m - 1) // m * m


def _dtype_bytes(dt):
    return jnp.dtype(dt).itemsize


# -----------------------------------------------------------------------------
# Kernel
# -----------------------------------------------------------------------------
def _make_kernel(n_out_pad: int, num_cov: int, total_cat: int):
    """Kernel with static shape info closed over."""

    def kernel(*refs):
        if num_cov > 0:
            (x_ref, cat_ref, lc_ref, w_ref, wc_ref, b_ref, gene_ref,
             scale_ref, rate_ref, drop_ref) = refs
        else:
            (x_ref, lc_ref, w_ref, b_ref, gene_ref,
             scale_ref, rate_ref, drop_ref) = refs
            cat_ref = wc_ref = None

        N = n_out_pad
        cdt = w_ref.dtype                      # MXU operand dtype (f32 or bf16)
        x = x_ref[...].astype(cdt)             # (TM, n_input)
        tm = x.shape[0]

        onehot = None
        if num_cov > 0:
            # Build the one-hot in-register (no HBM one-hot traffic).
            idx = cat_ref[...]                 # (TM, num_cov) int32, pre-offset
            iota = lax.broadcasted_iota(jnp.int32, (tm, total_cat), 1)
            oh = (idx[:, 0:1] == iota).astype(jnp.float32)
            for j in range(1, num_cov):
                oh = oh + (idx[:, j:j + 1] == iota).astype(jnp.float32)
            onehot = oh.astype(cdt)

        def head(col0):
            # Lane-aligned static column slice of the fused weights/bias.
            h = jnp.dot(x, w_ref[:, col0:col0 + N],
                        preferred_element_type=jnp.float32)
            if num_cov > 0:
                h = h + jnp.dot(onehot, wc_ref[:, col0:col0 + N],
                                preferred_element_type=jnp.float32)
            return h + b_ref[:, col0:col0 + N]   # folded eval-mode BatchNorm

        # Dropout head first: store immediately so its (TM, N) f32 intermediate
        # dies before the softmax temporaries, and its writeback DMA overlaps
        # the scale-head exp / reductions.
        drop_ref[...] = head(N).astype(drop_ref.dtype)

        # Scale head + numerically stable softmax; EUP reciprocal for the denom.
        hs = head(0)
        m = jnp.max(hs, axis=-1, keepdims=True)
        e = jnp.exp(hs - m)
        s = jnp.sum(e, axis=-1, keepdims=True)
        px_scale = e * pl.reciprocal(s, approx=True)

        # px_rate = exp(library) * cell_offset * px_scale * gene_offset
        lc = lc_ref[...]                               # (TM, 2): [library, cell]
        rate_row = jnp.exp(lc[:, 0:1]) * lc[:, 1:2]    # (TM, 1)

        scale_ref[...] = px_scale.astype(scale_ref.dtype)
        rate_ref[...] = (rate_row * px_scale * gene_ref[...]).astype(rate_ref.dtype)

    return kernel


# -----------------------------------------------------------------------------
# Parameter construction / one-time fusion
# -----------------------------------------------------------------------------
def init_params(key, n_input, n_output, n_cat_list):
    """Raw synthetic parameters matching the module's __init__ shapes."""
    n_in_total = n_input + sum(c for c in n_cat_list if c > 1)
    k1, k2 = jax.random.split(key)
    scale = 1.0 / jnp.sqrt(jnp.float32(n_in_total))
    w_fr = jax.random.normal(k1, (n_in_total, n_output), jnp.float32) * scale
    w_do = jax.random.normal(k2, (n_in_total, n_output), jnp.float32) * scale
    # BatchNorm1d defaults (eval mode): gamma=1, beta=0, running_mean=0, running_var=1
    bn = jnp.stack([
        jnp.ones((n_output,), jnp.float32),
        jnp.zeros((n_output,), jnp.float32),
        jnp.zeros((n_output,), jnp.float32),
        jnp.ones((n_output,), jnp.float32),
    ])
    return {"w_fr": w_fr, "w_do": w_do, "bn_fr": bn, "bn_do": bn,
            "n_cat_list": tuple(n_cat_list), "n_input": n_input,
            "n_output": n_output}


def fuse_params(params, weight_dtype=jnp.float32):
    """One-time static transform: fold BN into W/b, fuse the two heads into one
    weight (the kernel slices columns per head), split z-rows / covariate-rows,
    pad the gene axis to a multiple of 128, optionally store weights in bf16."""
    n_input = params["n_input"]
    n_output = params["n_output"]
    n_out_pad = _round_up(n_output, 128)
    pad_cols = n_out_pad - n_output

    def fold(w, bn):
        gamma, beta, mean, var = bn[0], bn[1], bn[2], bn[3]
        s = gamma * lax.rsqrt(var + BN_EPS)
        return w * s[None, :], beta - mean * s

    w_fr, b_fr = fold(params["w_fr"], params["bn_fr"])
    w_do, b_do = fold(params["w_do"], params["bn_do"])

    pad_w = lambda w: jnp.pad(w, ((0, 0), (0, pad_cols)))
    # Padded gene columns of the scale head get a huge negative (f32) bias so
    # the softmax puts exactly zero mass there; dropout head pads with 0.
    b_fr_p = jnp.concatenate(
        [b_fr, jnp.full((pad_cols,), NEG_BIG, jnp.float32)])
    b_do_p = jnp.pad(b_do, (0, pad_cols))

    w_full = jnp.concatenate([pad_w(w_fr), pad_w(w_do)],
                             axis=1).astype(weight_dtype)   # (n_in_tot, 2*N_pad)
    bias = jnp.concatenate([b_fr_p, b_do_p]).reshape(1, 2 * n_out_pad)

    total_cat = sum(c for c in params["n_cat_list"] if c > 1)
    w_z = w_full[:n_input]
    w_cat = w_full[n_input:] if total_cat > 0 else None

    return {"w_z": w_z, "w_cat": w_cat, "bias": bias,
            "n_cat_list": params["n_cat_list"],
            "n_input": n_input, "n_output": n_output, "n_out_pad": n_out_pad}


# -----------------------------------------------------------------------------
# Tile sizing (VMEM-aware)
# -----------------------------------------------------------------------------
def _pick_tile_rows(b_pad, n_input, n_cat_cols, n_out_pad, out_bytes, w_bytes,
                    n_w_rows, row_align):
    """Largest row tile (multiple of row_align) whose per-step working set fits
    a ~20 MiB budget (safe on v5e/v6e/v7x), further capped so the grid has
    >= ~8 steps when the batch allows it (feeds both v7x TensorCores)."""
    budget = 20 * 1024 * 1024
    # Grid-invariant (pinned) blocks; counted x2 in case single-buffering
    # (pl.Buffered(1)) is unavailable and they get the default double buffer.
    pinned = 2 * (n_w_rows * 2 * n_out_pad * w_bytes
                  + 2 * n_out_pad * 4 + n_out_pad * 4)
    per_row = (2 * 4 * (n_input + n_cat_cols + 2)   # double-buffered input tiles
               + 3 * 2 * n_out_pad * out_bytes      # 3 double-buffered output tiles
               + 4 * n_out_pad * 4)                 # live f32 N-wide temporaries
    avail = max(budget - pinned, row_align * per_row)
    tm = max(row_align, (avail // per_row) // row_align * row_align)
    tm = min(tm, 1024)
    # keep >= ~8 grid steps when the batch allows it (v7x megacore + pipelining)
    tm_for_steps = max(row_align, _round_up(pl.cdiv(b_pad, 8), row_align))
    tm = min(tm, tm_for_steps, b_pad)
    vmem_est = pinned + tm * per_row
    return int(tm), int(vmem_est)


# -----------------------------------------------------------------------------
# Wrapper (forward)
# -----------------------------------------------------------------------------
def linear_decoder_scvi_gene_cell(fused, dispersion, z, library, *cat_list,
                                  cell_offset, gene_offset,
                                  out_dtype=jnp.float32):
    """Mirrors LinearDecoderSCVIGeneCell.forward.
    Returns (px_scale, px_r=None, px_rate, px_dropout)."""
    del dispersion  # px_r is always None for this decoder
    z = jnp.asarray(z, jnp.float32)
    B, n_input = z.shape
    n_output = fused["n_output"]
    n_out_pad = fused["n_out_pad"]
    w_z, w_cat, bias = fused["w_z"], fused["w_cat"], fused["bias"]

    # Covariate indices with global column offsets (FCLayers skips n_cat <= 1).
    idx_cols, offset = [], 0
    for cat, n_cat in zip(cat_list, fused["n_cat_list"]):
        if n_cat > 1:
            idx_cols.append(jnp.asarray(cat).reshape(-1).astype(jnp.int32) + offset)
            offset += n_cat
    num_cov = len(idx_cols)
    total_cat = int(w_cat.shape[0]) if num_cov > 0 else 0
    cat_idx = jnp.stack(idx_cols, axis=1) if num_cov else None

    # library + cell_offset as a single (B, 2) block (one DMA per tile).
    libcell = jnp.stack([jnp.asarray(library, jnp.float32).reshape(-1),
                         jnp.asarray(cell_offset, jnp.float32).reshape(-1)],
                        axis=1)
    gene = jnp.pad(jnp.asarray(gene_offset, jnp.float32).reshape(1, n_output),
                   ((0, 0), (0, n_out_pad - n_output)))

    out_bytes = _dtype_bytes(out_dtype)
    w_bytes = _dtype_bytes(w_z.dtype)
    row_align = max(8, 32 // out_bytes)   # 8 rows for f32 outputs, 16 for bf16

    # Pad the batch only to the output-row alignment (NOT to TM): Pallas masks
    # the partial edge grid block, so no over-padded rows reach HBM.
    B_pad = _round_up(B, row_align)
    if B_pad != B:
        row_pad = ((0, B_pad - B), (0, 0))
        z = jnp.pad(z, row_pad)
        libcell = jnp.pad(libcell, row_pad)
        if num_cov:
            cat_idx = jnp.pad(cat_idx, row_pad)

    n_w_rows = n_input + total_cat
    TM, vmem_est = _pick_tile_rows(B_pad, n_input, max(num_cov, 1), n_out_pad,
                                   out_bytes, w_bytes, n_w_rows, row_align)
    grid = (pl.cdiv(B_pad, TM),)
    vmem_limit = int(min(48 * 1024 * 1024, max(2 * vmem_est, 16 * 1024 * 1024)))

    tile = lambda w: pl.BlockSpec((TM, w), lambda i: (i, 0))
    out_spec = pl.BlockSpec((TM, n_out_pad), lambda i: (i, 0))
    out_shapes = tuple(jax.ShapeDtypeStruct((B_pad, n_out_pad), out_dtype)
                       for _ in range(3))

    kernel = _make_kernel(n_out_pad, num_cov, total_cat)

    args = [z]
    if num_cov:
        args.append(cat_idx)
    args.append(libcell)
    args.append(w_z)
    if num_cov:
        args.append(w_cat)
    args += [bias, gene]

    def build(single_buffer_weights):
        pin_kwargs = {}
        if single_buffer_weights and hasattr(pl, "Buffered"):
            # Constant-index blocks are DMA'd once; a single VMEM buffer halves
            # their resident footprint.
            pin_kwargs = {"pipeline_mode": pl.Buffered(1)}
        pinned = lambda shape: pl.BlockSpec(shape, lambda i: (0, 0), **pin_kwargs)
        in_specs = [tile(n_input)]                              # z tile
        if num_cov:
            in_specs.append(tile(num_cov))                      # cat indices tile
        in_specs.append(tile(2))                                # [library, cell]
        in_specs.append(pinned((n_input, 2 * n_out_pad)))       # fused W (z rows)
        if num_cov:
            in_specs.append(pinned((total_cat, 2 * n_out_pad)))  # fused W (cov rows)
        in_specs += [pinned((1, 2 * n_out_pad)),                # fused bias
                     pinned((1, n_out_pad))]                    # gene_offset
        return pl.pallas_call(
            kernel,
            out_shape=out_shapes,
            grid=grid,
            in_specs=in_specs,
            out_specs=(out_spec, out_spec, out_spec),
            compiler_params=pltpu.CompilerParams(
                dimension_semantics=("parallel",),
                vmem_limit_bytes=vmem_limit),
        )

    try:
        px_scale, px_rate, px_dropout = build(True)(*args)
    except Exception:
        # pl.Buffered(1) not supported by this jax/Mosaic build: fall back to
        # default double-buffered pinned blocks (already accounted in budget).
        px_scale, px_rate, px_dropout = build(False)(*args)

    if B_pad != B or n_out_pad != n_output:
        px_scale = px_scale[:B, :n_output]
        px_rate = px_rate[:B, :n_output]
        px_dropout = px_dropout[:B, :n_output]
    return px_scale, None, px_rate, px_dropout


# -----------------------------------------------------------------------------
# Pure-JAX reference (uses the raw, unfused parameters, all f32)
# -----------------------------------------------------------------------------
def _reference(params, z, library, cat_list, cell_offset, gene_offset):
    x = z
    for cat, n_cat in zip(cat_list, params["n_cat_list"]):
        if n_cat > 1:
            x = jnp.concatenate(
                [x, jax.nn.one_hot(cat, n_cat, dtype=jnp.float32)], -1)

    def bn(h, p):
        return (h - p[2]) * p[0] / jnp.sqrt(p[3] + BN_EPS) + p[1]

    raw = bn(x @ params["w_fr"], params["bn_fr"])
    px_scale = jax.nn.softmax(raw, axis=-1)
    px_dropout = bn(x @ params["w_do"], params["bn_do"])
    B = z.shape[0]
    px_rate = (jnp.exp(library.reshape(B, 1)) * cell_offset.reshape(B, 1)
               * px_scale * gene_offset.reshape(1, -1))
    return px_scale, px_rate, px_dropout


# -----------------------------------------------------------------------------
# Self-test
# -----------------------------------------------------------------------------
def _run_case(case_key, B, n_input, n_output, n_cat_list,
              weight_dtype, out_dtype, rtol, atol):
    keys = jax.random.split(case_key, 8)
    z = jax.random.normal(keys[0], (B, n_input), jnp.float32)
    library = jax.random.normal(keys[1], (B, 1), jnp.float32) * 0.1 + 1.0
    cats = tuple(jax.random.randint(keys[2 + i], (B,), 0, max(n, 1))
                 for i, n in enumerate(n_cat_list))
    cell_offset = jax.random.uniform(keys[5], (B,), jnp.float32, 0.5, 1.5)
    gene_offset = jax.random.uniform(keys[6], (n_output,), jnp.float32, 0.5, 1.5)

    params = init_params(keys[7], n_input, n_output, n_cat_list)
    fused = fuse_params(params, weight_dtype=weight_dtype)

    px_scale, px_r, px_rate, px_dropout = linear_decoder_scvi_gene_cell(
        fused, "gene-cell", z, library, *cats,
        cell_offset=cell_offset, gene_offset=gene_offset, out_dtype=out_dtype)
    jax.block_until_ready((px_scale, px_rate, px_dropout))

    assert px_r is None
    assert px_scale.shape == (B, n_output)
    assert px_rate.shape == (B, n_output)
    assert px_dropout.shape == (B, n_output)

    ref_scale, ref_rate, ref_dropout = _reference(
        params, z, library, cats, cell_offset, gene_offset)
    for name, got, ref in (("px_scale", px_scale, ref_scale),
                           ("px_rate", px_rate, ref_rate),
                           ("px_dropout", px_dropout, ref_dropout)):
        got32 = got.astype(jnp.float32)
        err = float(jnp.max(jnp.abs(got32 - ref)))
        assert jnp.allclose(got32, ref, rtol=rtol, atol=atol), (
            f"{name} mismatch (max abs err {err}) for case "
            f"B={B} n_out={n_output} cats={n_cat_list} w={weight_dtype}")


if __name__ == "__main__":
    root = jax.random.PRNGKey(0)
    ks = jax.random.split(root, 4)

    # 1) exact path, aligned shapes (no padding, no post-kernel slices)
    _run_case(ks[0], B=8, n_input=32, n_output=128, n_cat_list=(3,),
              weight_dtype=jnp.float32, out_dtype=jnp.float32,
              rtol=1e-3, atol=1e-3)
    # 2) fast path: bf16 MXU operands + bf16 output stores
    _run_case(ks[1], B=16, n_input=32, n_output=128, n_cat_list=(3,),
              weight_dtype=jnp.bfloat16, out_dtype=jnp.bfloat16,
              rtol=5e-2, atol=2e-2)
    # 3) ragged batch / gene count + an n_cat<=1 covariate (skipped by FCLayers)
    _run_case(ks[2], B=10, n_input=16, n_output=200, n_cat_list=(1, 4),
              weight_dtype=jnp.float32, out_dtype=jnp.float32,
              rtol=1e-3, atol=1e-3)
    # 4) no covariates + a masked partial edge grid block (B not multiple of TM)
    _run_case(ks[3], B=72, n_input=24, n_output=256, n_cat_list=(),
              weight_dtype=jnp.float32, out_dtype=jnp.float32,
              rtol=1e-3, atol=1e-3)

    print("KERNEL_OK")
</pallas_src>

<mosaic_0001>
module attributes {stable_mosaic.version = 11 : i64} {
  func.func @kernel(%arg0: i32, %arg1: memref<8x32xf32, #tpu.memory_space<vmem>>, %arg2: memref<8x1xi32, #tpu.memory_space<vmem>>, %arg3: memref<8x2xf32, #tpu.memory_space<vmem>>, %arg4: memref<32x256xf32, #tpu.memory_space<vmem>>, %arg5: memref<3x256xf32, #tpu.memory_space<vmem>>, %arg6: memref<1x256xf32, #tpu.memory_space<vmem>>, %arg7: memref<1x128xf32, #tpu.memory_space<vmem>>, %arg8: memref<8x128xf32, #tpu.memory_space<vmem>>, %arg9: memref<8x128xf32, #tpu.memory_space<vmem>>, %arg10: memref<8x128xf32, #tpu.memory_space<vmem>>) attributes {dimension_semantics = [#tpu.dimension_semantics<parallel>], iteration_bounds = array<i64: 1>, scalar_prefetch = 0 : i64, scratch_operands = 0 : i64, tpu.core_type = #tpu.core_type<tc>, window_params = [{transform_indices = @transform_0, window_bounds = array<i64: 8, 32>}, {transform_indices = @transform_1, window_bounds = array<i64: 8, 1>}, {transform_indices = @transform_2, window_bounds = array<i64: 8, 2>}, {pipeline_mode = #tpu.pipeline_mode<synchronous>, transform_indices = @transform_3, window_bounds = array<i64: 32, 256>}, {pipeline_mode = #tpu.pipeline_mode<synchronous>, transform_indices = @transform_4, window_bounds = array<i64: 3, 256>}, {pipeline_mode = #tpu.pipeline_mode<synchronous>, transform_indices = @transform_5, window_bounds = array<i64: 1, 256>}, {pipeline_mode = #tpu.pipeline_mode<synchronous>, transform_indices = @transform_6, window_bounds = array<i64: 1, 128>}, {transform_indices = @transform_7, window_bounds = array<i64: 8, 128>}, {transform_indices = @transform_8, window_bounds = array<i64: 8, 128>}, {transform_indices = @transform_9, window_bounds = array<i64: 8, 128>}]} {
    %c0 = arith.constant 0 : index
    %c0_0 = arith.constant 0 : index
    %0 = vector.load %arg1[%c0, %c0_0] : memref<8x32xf32, #tpu.memory_space<vmem>>, vector<8x32xf32>
    %c0_1 = arith.constant 0 : index
    %c0_2 = arith.constant 0 : index
    %1 = vector.load %arg2[%c0_1, %c0_2] : memref<8x1xi32, #tpu.memory_space<vmem>>, vector<8x1xi32>
    %2 = tpu.iota {dimensions = array<i32: 1>} : vector<8x3xi32>
    %3 = vector.broadcast %1 : vector<8x1xi32> to vector<8x3xi32>
    %4 = arith.cmpi eq, %3, %2 : vector<8x3xi32>
    %5 = arith.extui %4 : vector<8x3xi1> to vector<8x3xi32>
    %6 = arith.sitofp %5 : vector<8x3xi32> to vector<8x3xf32>
    %c0_3 = arith.constant 0 : index
    %c128 = arith.constant 128 : index
    %7 = vector.load %arg4[%c0_3, %c128] : memref<32x256xf32, #tpu.memory_space<vmem>>, vector<32x128xf32>
    %cst = arith.constant dense<0.000000e+00> : vector<8x128xf32>
    %8 = tpu.matmul %0, %7, %cst {dimension_numbers = #tpu.dot_dimension_numbers<[1], [0], [0], [1], [0, 0, 1, 1], [], []>} : vector<8x32xf32>, vector<32x128xf32>, vector<8x128xf32> -> vector<8x128xf32>
    %c0_4 = arith.constant 0 : index
    %c128_5 = arith.constant 128 : index
    %9 = vector.load %arg5[%c0_4, %c128_5] : memref<3x256xf32, #tpu.memory_space<vmem>>, vector<3x128xf32>
    %cst_6 = arith.constant dense<0.000000e+00> : vector<8x128xf32>
    %10 = tpu.matmul %6, %9, %cst_6 {dimension_numbers = #tpu.dot_dimension_numbers<[1], [0], [0], [1], [0, 0, 1, 1], [], []>} : vector<8x3xf32>, vector<3x128xf32>, vector<8x128xf32> -> vector<8x128xf32>
    %11 = arith.addf %8, %10 : vector<8x128xf32>
    %c0_7 = arith.constant 0 : index
    %c128_8 = arith.constant 128 : index
    %12 = vector.load %arg6[%c0_7, %c128_8] : memref<1x256xf32, #tpu.memory_space<vmem>>, vector<1x128xf32>
    %13 = vector.broadcast %12 : vector<1x128xf32> to vector<8x128xf32>
    %14 = arith.addf %11, %13 : vector<8x128xf32>
    %c0_9 = arith.constant 0 : index
    %c0_10 = arith.constant 0 : index
    %15 = vector.load %arg10[%c0_9, %c0_10] : memref<8x128xf32, #tpu.memory_space<vmem>>, vector<8x128xf32>
    tpu.vector_store %arg10[%c0_9, %c0_10], %14 {strides = array<i32>} : memref<8x128xf32, #tpu.memory_space<vmem>>, vector<8x128xf32>,
    %c0_11 = arith.constant 0 : index
    %c0_12 = arith.constant 0 : index
    %16 = vector.load %arg4[%c0_11, %c0_12] : memref<32x256xf32, #tpu.memory_space<vmem>>, vector<32x128xf32>
    %cst_13 = arith.constant dense<0.000000e+00> : vector<8x128xf32>
    %17 = tpu.matmul %0, %16, %cst_13 {dimension_numbers = #tpu.dot_dimension_numbers<[1], [0], [0], [1], [0, 0, 1, 1], [], []>} : vector<8x32xf32>, vector<32x128xf32>, vector<8x128xf32> -> vector<8x128xf32>
    %c0_14 = arith.constant 0 : index
    %c0_15 = arith.constant 0 : index
    %18 = vector.load %arg5[%c0_14, %c0_15] : memref<3x256xf32, #tpu.memory_space<vmem>>, vector<3x128xf32>
    %cst_16 = arith.constant dense<0.000000e+00> : vector<8x128xf32>
    %19 = tpu.matmul %6, %18, %cst_16 {dimension_numbers = #tpu.dot_dimension_numbers<[1], [0], [0], [1], [0, 0, 1, 1], [], []>} : vector<8x3xf32>, vector<3x128xf32>, vector<8x128xf32> -> vector<8x128xf32>
    %20 = arith.addf %17, %19 : vector<8x128xf32>
    %c0_17 = arith.constant 0 : index
    %c0_18 = arith.constant 0 : index
    %21 = vector.load %arg6[%c0_17, %c0_18] : memref<1x256xf32, #tpu.memory_space<vmem>>, vector<1x128xf32>
    %22 = vector.broadcast %21 : vector<1x128xf32> to vector<8x128xf32>
    %23 = arith.addf %20, %22 : vector<8x128xf32>
    %cst_19 = arith.constant dense<0xFF800000> : vector<8xf32>
    %24 = vector.multi_reduction <maximumf>, %23, %cst_19 [1] : vector<8x128xf32> to vector<8xf32>
    %25 = vector.shape_cast %24 : vector<8xf32> to vector<8x1xf32>
    %26 = vector.broadcast %25 : vector<8x1xf32> to vector<8x128xf32>
    %27 = arith.subf %23, %26 : vector<8x128xf32>
    %28 = math.exp %27 : vector<8x128xf32>
    %cst_20 = arith.constant dense<0.000000e+00> : vector<8xf32>
    %29 = vector.multi_reduction <add>, %28, %cst_20 [1] : vector<8x128xf32> to vector<8xf32>
    %30 = vector.shape_cast %29 : vector<8xf32> to vector<8x1xf32>
    %31 = tpu.reciprocal %30 {approx = true} : vector<8x1xf32> -> vector<8x1xf32>
    %32 = vector.broadcast %31 : vector<8x1xf32> to vector<8x128xf32>
    %33 = arith.mulf %28, %32 : vector<8x128xf32>
    %c0_21 = arith.constant 0 : index
    %c0_22 = arith.constant 0 : index
    %34 = vector.load %arg3[%c0_21, %c0_22] : memref<8x2xf32, #tpu.memory_space<vmem>>, vector<8x2xf32>
    %35 = vector.extract_strided_slice %34 {offsets = [0, 0], sizes = [8, 1], strides = [1, 1]} : vector<8x2xf32> to vector<8x1xf32>
    %36 = math.exp %35 : vector<8x1xf32>
    %37 = vector.extract_strided_slice %34 {offsets = [0, 1], sizes = [8, 1], strides = [1, 1]} : vector<8x2xf32> to vector<8x1xf32>
    %38 = arith.mulf %36, %37 : vector<8x1xf32>
    %c0_23 = arith.constant 0 : index
    %c0_24 = arith.constant 0 : index
    %39 = vector.load %arg8[%c0_23, %c0_24] : memref<8x128xf32, #tpu.memory_space<vmem>>, vector<8x128xf32>
    tpu.vector_store %arg8[%c0_23, %c0_24], %33 {strides = array<i32>} : memref<8x128xf32, #tpu.memory_space<vmem>>, vector<8x128xf32>,
    %40 = vector.broadcast %38 : vector<8x1xf32> to vector<8x128xf32>
    %41 = arith.mulf %40, %33 : vector<8x128xf32>
    %c0_25 = arith.constant 0 : index
    %c0_26 = arith.constant 0 : index
    %42 = vector.load %arg7[%c0_25, %c0_26] : memref<1x128xf32, #tpu.memory_space<vmem>>, vector<1x128xf32>
    %43 = vector.broadcast %42 : vector<1x128xf32> to vector<8x128xf32>
    %44 = arith.mulf %41, %43 : vector<8x128xf32>
    %c0_27 = arith.constant 0 : index
    %c0_28 = arith.constant 0 : index
    %45 = vector.load %arg9[%c0_27, %c0_28] : memref<8x128xf32, #tpu.memory_space<vmem>>, vector<8x128xf32>
    tpu.vector_store %arg9[%c0_27, %c0_28], %44 {strides = array<i32>} : memref<8x128xf32, #tpu.memory_space<vmem>>, vector<8x128xf32>,
    return
  }
  func.func @transform_0(%arg0: i32) -> (i32, i32) {
    %c0_i32 = arith.constant 0 : i32
    %c0_i32_0 = arith.constant 0 : i32
    return %arg0, %c0_i32 : i32, i32
  }
  func.func @transform_1(%arg0: i32) -> (i32, i32) {
    %c0_i32 = arith.constant 0 : i32
    %c0_i32_0 = arith.constant 0 : i32
    return %arg0, %c0_i32 : i32, i32
  }
  func.func @transform_2(%arg0: i32) -> (i32, i32) {
    %c0_i32 = arith.constant 0 : i32
    %c0_i32_0 = arith.constant 0 : i32
    return %arg0, %c0_i32 : i32, i32
  }
  func.func @transform_3(%arg0: i32) -> (i32, i32) {
    %c0_i32 = arith.constant 0 : i32
    %c0_i32_0 = arith.constant 0 : i32
    %c0_i32_1 = arith.constant 0 : i32
    return %c0_i32, %c0_i32_0 : i32, i32
  }
  func.func @transform_4(%arg0: i32) -> (i32, i32) {
    %c0_i32 = arith.constant 0 : i32
    %c0_i32_0 = arith.constant 0 : i32
    %c0_i32_1 = arith.constant 0 : i32
    return %c0_i32, %c0_i32_0 : i32, i32
  }
  func.func @transform_5(%arg0: i32) -> (i32, i32) {
    %c0_i32 = arith.constant 0 : i32
    %c0_i32_0 = arith.constant 0 : i32
    %c0_i32_1 = arith.constant 0 : i32
    return %c0_i32, %c0_i32_0 : i32, i32
  }
  func.func @transform_6(%arg0: i32) -> (i32, i32) {
    %c0_i32 = arith.constant 0 : i32
    %c0_i32_0 = arith.constant 0 : i32
    %c0_i32_1 = arith.constant 0 : i32
    return %c0_i32, %c0_i32_0 : i32, i32
  }
  func.func @transform_7(%arg0: i32) -> (i32, i32) {
    %c0_i32 = arith.constant 0 : i32
    %c0_i32_0 = arith.constant 0 : i32
    return %arg0, %c0_i32 : i32, i32
  }
  func.func @transform_8(%arg0: i32) -> (i32, i32) {
    %c0_i32 = arith.constant 0 : i32
    %c0_i32_0 = arith.constant 0 : i32
    return %arg0, %c0_i32 : i32, i32
  }
  func.func @transform_9(%arg0: i32) -> (i32, i32) {
    %c0_i32 = arith.constant 0 : i32
    %c0_i32_0 = arith.constant 0 : i32
    return %arg0, %c0_i32 : i32, i32
  }
}

module attributes {stable_mosaic.version = 11 : i64} {
  func.func @kernel(%arg0: i32, %arg1: memref<8x32xf32, #tpu.memory_space<vmem>>, %arg2: memref<8x1xi32, #tpu.memory_space<vmem>>, %arg3: memref<8x2xf32, #tpu.memory_space<vmem>>, %arg4: memref<32x256xf32, #tpu.memory_space<vmem>>, %arg5: memref<3x256xf32, #tpu.memory_space<vmem>>, %arg6: memref<1x256xf32, #tpu.memory_space<vmem>>, %arg7: memref<1x128xf32, #tpu.memory_space<vmem>>, %arg8: memref<8x128xf32, #tpu.memory_space<vmem>>, %arg9: memref<8x128xf32, #tpu.memory_space<vmem>>, %arg10: memref<8x128xf32, #tpu.memory_space<vmem>>) attributes {dimension_semantics = [#tpu.dimension_semantics<parallel>], iteration_bounds = array<i64: 1>, scalar_prefetch = 0 : i64, scratch_operands = 0 : i64, tpu.core_type = #tpu.core_type<tc>, window_params = [{transform_indices = @transform_0, window_bounds = array<i64: 8, 32>}, {transform_indices = @transform_1, window_bounds = array<i64: 8, 1>}, {transform_indices = @transform_2, window_bounds = array<i64: 8, 2>}, {pipeline_mode = #tpu.pipeline_mode<synchronous>, transform_indices = @transform_3, window_bounds = array<i64: 32, 256>}, {pipeline_mode = #tpu.pipeline_mode<synchronous>, transform_indices = @transform_4, window_bounds = array<i64: 3, 256>}, {pipeline_mode = #tpu.pipeline_mode<synchronous>, transform_indices = @transform_5, window_bounds = array<i64: 1, 256>}, {pipeline_mode = #tpu.pipeline_mode<synchronous>, transform_indices = @transform_6, window_bounds = array<i64: 1, 128>}, {transform_indices = @transform_7, window_bounds = array<i64: 8, 128>}, {transform_indices = @transform_8, window_bounds = array<i64: 8, 128>}, {transform_indices = @transform_9, window_bounds = array<i64: 8, 128>}]} {
    %c0 = arith.constant 0 : index
    %c0_0 = arith.constant 0 : index
    %0 = vector.load %arg1[%c0, %c0_0] : memref<8x32xf32, #tpu.memory_space<vmem>>, vector<8x32xf32>
    %c0_1 = arith.constant 0 : index
    %c0_2 = arith.constant 0 : index
    %1 = vector.load %arg2[%c0_1, %c0_2] : memref<8x1xi32, #tpu.memory_space<vmem>>, vector<8x1xi32>
    %2 = tpu.iota {dimensions = array<i32: 1>} : vector<8x3xi32>
    %3 = vector.broadcast %1 : vector<8x1xi32> to vector<8x3xi32>
    %4 = arith.cmpi eq, %3, %2 : vector<8x3xi32>
    %5 = arith.extui %4 : vector<8x3xi1> to vector<8x3xi32>
    %6 = arith.sitofp %5 : vector<8x3xi32> to vector<8x3xf32>
    %c0_3 = arith.constant 0 : index
    %c128 = arith.constant 128 : index
    %7 = vector.load %arg4[%c0_3, %c128] : memref<32x256xf32, #tpu.memory_space<vmem>>, vector<32x128xf32>
    %cst = arith.constant dense<0.000000e+00> : vector<8x128xf32>
    %8 = tpu.matmul %0, %7, %cst {dimension_numbers = #tpu.dot_dimension_numbers<[1], [0], [0], [1], [0, 0, 1, 1], [], []>} : vector<8x32xf32>, vector<32x128xf32>, vector<8x128xf32> -> vector<8x128xf32>
    %c0_4 = arith.constant 0 : index
    %c128_5 = arith.constant 128 : index
    %9 = vector.load %arg5[%c0_4, %c128_5] : memref<3x256xf32, #tpu.memory_space<vmem>>, vector<3x128xf32>
    %cst_6 = arith.constant dense<0.000000e+00> : vector<8x128xf32>
    %10 = tpu.matmul %6, %9, %cst_6 {dimension_numbers = #tpu.dot_dimension_numbers<[1], [0], [0], [1], [0, 0, 1, 1], [], []>} : vector<8x3xf32>, vector<3x128xf32>, vector<8x128xf32> -> vector<8x128xf32>
    %11 = arith.addf %8, %10 : vector<8x128xf32>
    %c0_7 = arith.constant 0 : index
    %c128_8 = arith.constant 128 : index
    %12 = vector.load %arg6[%c0_7, %c128_8] : memref<1x256xf32, #tpu.memory_space<vmem>>, vector<1x128xf32>
    %13 = vector.broadcast %12 : vector<1x128xf32> to vector<8x128xf32>
    %14 = arith.addf %11, %13 : vector<8x128xf32>
    %c0_9 = arith.constant 0 : index
    %c0_10 = arith.constant 0 : index
    %15 = vector.load %arg10[%c0_9, %c0_10] : memref<8x128xf32, #tpu.memory_space<vmem>>, vector<8x128xf32>
    tpu.vector_store %arg10[%c0_9, %c0_10], %14 {strides = array<i32>} : memref<8x128xf32, #tpu.memory_space<vmem>>, vector<8x128xf32>,
    %c0_11 = arith.constant 0 : index
    %c0_12 = arith.constant 0 : index
    %16 = vector.load %arg4[%c0_11, %c0_12] : memref<32x256xf32, #tpu.memory_space<vmem>>, vector<32x128xf32>
    %cst_13 = arith.constant dense<0.000000e+00> : vector<8x128xf32>
    %17 = tpu.matmul %0, %16, %cst_13 {dimension_numbers = #tpu.dot_dimension_numbers<[1], [0], [0], [1], [0, 0, 1, 1], [], []>} : vector<8x32xf32>, vector<32x128xf32>, vector<8x128xf32> -> vector<8x128xf32>
    %c0_14 = arith.constant 0 : index
    %c0_15 = arith.constant 0 : index
    %18 = vector.load %arg5[%c0_14, %c0_15] : memref<3x256xf32, #tpu.memory_space<vmem>>, vector<3x128xf32>
    %cst_16 = arith.constant dense<0.000000e+00> : vector<8x128xf32>
    %19 = tpu.matmul %6, %18, %cst_16 {dimension_numbers = #tpu.dot_dimension_numbers<[1], [0], [0], [1], [0, 0, 1, 1], [], []>} : vector<8x3xf32>, vector<3x128xf32>, vector<8x128xf32> -> vector<8x128xf32>
    %20 = arith.addf %17, %19 : vector<8x128xf32>
    %c0_17 = arith.constant 0 : index
    %c0_18 = arith.constant 0 : index
    %21 = vector.load %arg6[%c0_17, %c0_18] : memref<1x256xf32, #tpu.memory_space<vmem>>, vector<1x128xf32>
    %22 = vector.broadcast %21 : vector<1x128xf32> to vector<8x128xf32>
    %23 = arith.addf %20, %22 : vector<8x128xf32>
    %cst_19 = arith.constant dense<0xFF800000> : vector<8xf32>
    %24 = vector.multi_reduction <maximumf>, %23, %cst_19 [1] : vector<8x128xf32> to vector<8xf32>
    %25 = vector.shape_cast %24 : vector<8xf32> to vector<8x1xf32>
    %26 = vector.broadcast %25 : vector<8x1xf32> to vector<8x128xf32>
    %27 = arith.subf %23, %26 : vector<8x128xf32>
    %28 = math.exp %27 : vector<8x128xf32>
    %cst_20 = arith.constant dense<0.000000e+00> : vector<8xf32>
    %29 = vector.multi_reduction <add>, %28, %cst_20 [1] : vector<8x128xf32> to vector<8xf32>
    %30 = vector.shape_cast %29 : vector<8xf32> to vector<8x1xf32>
    %31 = tpu.reciprocal %30 {approx = true} : vector<8x1xf32> -> vector<8x1xf32>
    %32 = vector.broadcast %31 : vector<8x1xf32> to vector<8x128xf32>
    %33 = arith.mulf %28, %32 : vector<8x128xf32>
    %c0_21 = arith.constant 0 : index
    %c0_22 = arith.constant 0 : index
    %34 = vector.load %arg3[%c0_21, %c0_22] : memref<8x2xf32, #tpu.memory_space<vmem>>, vector<8x2xf32>
    %35 = vector.extract_strided_slice %34 {offsets = [0, 0], sizes = [8, 1], strides = [1, 1]} : vector<8x2xf32> to vector<8x1xf32>
    %36 = math.exp %35 : vector<8x1xf32>
    %37 = vector.extract_strided_slice %34 {offsets = [0, 1], sizes = [8, 1], strides = [1, 1]} : vector<8x2xf32> to vector<8x1xf32>
    %38 = arith.mulf %36, %37 : vector<8x1xf32>
    %c0_23 = arith.constant 0 : index
    %c0_24 = arith.constant 0 : index
    %39 = vector.load %arg8[%c0_23, %c0_24] : memref<8x128xf32, #tpu.memory_space<vmem>>, vector<8x128xf32>
    tpu.vector_store %arg8[%c0_23, %c0_24], %33 {strides = array<i32>} : memref<8x128xf32, #tpu.memory_space<vmem>>, vector<8x128xf32>,
    %40 = vector.broadcast %38 : vector<8x1xf32> to vector<8x128xf32>
    %41 = arith.mulf %40, %33 : vector<8x128xf32>
    %c0_25 = arith.constant 0 : index
    %c0_26 = arith.constant 0 : index
    %42 = vector.load %arg7[%c0_25, %c0_26] : memref<1x128xf32, #tpu.memory_space<vmem>>, vector<1x128xf32>
    %43 = vector.broadcast %42 : vector<1x128xf32> to vector<8x128xf32>
    %44 = arith.mulf %41, %43 : vector<8x128xf32>
    %c0_27 = arith.constant 0 : index
    %c0_28 = arith.constant 0 : index
    %45 = vector.load %arg9[%c0_27, %c0_28] : memref<8x128xf32, #tpu.memory_space<vmem>>, vector<8x128xf32>
    tpu.vector_store %arg9[%c0_27, %c0_28], %44 {strides = array<i32>} : memref<8x128xf32, #tpu.memory_space<vmem>>, vector<8x128xf32>,
    return
  }
  func.func @transform_0(%arg0: i32) -> (i32, i32) {
    %c0_i32 = arith.constant 0 : i32
    %c0_i32_0 = arith.constant 0 : i32
    return %arg0, %c0_i32 : i32, i32
  }
  func.func @transform_1(%arg0: i32) -> (i32, i32) {
    %c0_i32 = arith.constant 0 : i32
    %c0_i32_0 = arith.constant 0 : i32
    return %arg0, %c0_i32 : i32, i32
  }
  func.func @transform_2(%arg0: i32) -> (i32, i32) {
    %c0_i32 = arith.constant 0 : i32
    %c0_i32_0 = arith.constant 0 : i32
    return %arg0, %c0_i32 : i32, i32
  }
  func.func @transform_3(%arg0: i32) -> (i32, i32) {
    %c0_i32 = arith.constant 0 : i32
    %c0_i32_0 = arith.constant 0 : i32
    %c0_i32_1 = arith.constant 0 : i32
    return %c0_i32, %c0_i32_0 : i32, i32
  }
  func.func @transform_4(%arg0: i32) -> (i32, i32) {
    %c0_i32 = arith.constant 0 : i32
    %c0_i32_0 = arith.constant 0 : i32
    %c0_i32_1 = arith.constant 0 : i32
    return %c0_i32, %c0_i32_0 : i32, i32
  }
  func.func @transform_5(%arg0: i32) -> (i32, i32) {
    %c0_i32 = arith.constant 0 : i32
    %c0_i32_0 = arith.constant 0 : i32
    %c0_i32_1 = arith.constant 0 : i32
    return %c0_i32, %c0_i32_0 : i32, i32
  }
  func.func @transform_6(%arg0: i32) -> (i32, i32) {
    %c0_i32 = arith.constant 0 : i32
    %c0_i32_0 = arith.constant 0 : i32
    %c0_i32_1 = arith.constant 0 : i32
    return %c0_i32, %c0_i32_0 : i32, i32
  }
  func.func @transform_7(%arg0: i32) -> (i32, i32) {
    %c0_i32 = arith.constant 0 : i32
    %c0_i32_0 = arith.constant 0 : i32
    return %arg0, %c0_i32 : i32, i32
  }
  func.func @transform_8(%arg0: i32) -> (i32, i32) {
    %c0_i32 = arith.constant 0 : i32
    %c0_i32_0 = arith.constant 0 : i32
    return %arg0, %c0_i32 : i32, i32
  }
  func.func @transform_9(%arg0: i32) -> (i32, i32) {
    %c0_i32 = arith.constant 0 : i32
    %c0_i32_0 = arith.constant 0 : i32
    return %arg0, %c0_i32 : i32, i32
  }
}

</mosaic_0001>

<llo_original>
// kernel: tpu_custom_call.1
$region0: #{tpu_custom_call.1}
  #allocation0 [shape = 'u32[]', space=smem, size = 0x4, offset = 0x4, fixed_abs, tag = 'smem constant byte address 0x4 - core index']
  #allocation1 [shape = 'u32[144,128]{1,0:T(1,128)}', space=vmem, size = 0x12000, scoped, tag = 'internal scratch']
  %s0 = inlined_call_operand.vmem [shape: f32[8,32], index: 0, kind: input, shape index: {}]
  %s1 = inlined_call_operand.vmem [shape: s32[8,1], index: 1, kind: input, shape index: {}]
  %s2 = inlined_call_operand.vmem [shape: f32[8,2], index: 2, kind: input, shape index: {}]
  %s3 = inlined_call_operand.hbm [shape: f32[32,256], index: 3, kind: input, shape index: {}]
  %s4 = inlined_call_operand.vmem [shape: f32[3,256], index: 4, kind: input, shape index: {}]
  %s5 = inlined_call_operand.vmem [shape: f32[1,256], index: 5, kind: input, shape index: {}]
  %s6 = inlined_call_operand.vmem [shape: f32[1,128], index: 6, kind: input, shape index: {}]
  %s7 = inlined_call_operand.hbm [shape: f32[8,128], index: 7, kind: output, shape index: {0}]
  %s8 = inlined_call_operand.hbm [shape: f32[8,128], index: 8, kind: output, shape index: {1}]
  %s9 = inlined_call_operand.hbm [shape: f32[8,128], index: 9, kind: output, shape index: {2}]
  %10 = xla_tuple %s7, %s8, %s9
  %s11 = sld [smem:[#allocation0]]
  $region58: #{tpu_custom_call.1} parent=0
    _
  %s13 = ssub.s32 1, %s11
  %s14 = scalar_select 0, %s13, %s11
  $region1: #{tpu_custom_call.1} parent=0
    #allocation2 [shape = 'u8[32768]{0}', space=vmem, size = 0x8000, scoped, tag = 'input window, operand 3, single buffered']
    #allocation3 [shape = 's32[1]{0}', space=sflag, size = 0x4, scoped, tag = 'scoped memory for tpu_custom_call.1']
    #allocation4 [shape = 's32[1]{0}', space=sflag, size = 0x4, scoped, tag = 'scoped memory for tpu_custom_call.1']
    #allocation5 [shape = 'u8[4096]{0}', space=vmem, size = 0x1000, scoped, tag = 'output window, operand 0, single buffered']
    #allocation6 [shape = 'u8[4096]{0}', space=vmem, size = 0x1000, scoped, tag = 'output window, operand 1, single buffered']
    #allocation7 [shape = 's32[1]{0}', space=sflag, size = 0x4, scoped, tag = 'scoped memory for tpu_custom_call.1']
    #allocation8 [shape = 'u8[4096]{0}', space=vmem, size = 0x1000, scoped, tag = 'output window, operand 2, single buffered']
    %15 = vsyncpa [#allocation3], 0
    %16 = vsyncpa [#allocation4], 0
    %17 = vsyncpa [#allocation7], 0
    // Predicated region
    $region2: #{tpu_custom_call.1} parent=1 // pred_check
      _
    $region3: #{tpu_custom_call.1} parent=1 // pred_check_branch
      %19 = sbr.rel (0) target = $region5
    $region4: #{tpu_custom_call.1} parent=1 // pred_region
      _
    $region5: #{tpu_custom_call.1} parent=1 // pred_fallthru
      _
    // Predicated region
    $region6: #{tpu_custom_call.1} parent=1 // pred_check
      _
    $region7: #{tpu_custom_call.1} parent=1 // pred_check_branch
      %21 = sbr.rel (0) target = $region9
    $region8: #{tpu_custom_call.1} parent=1 // pred_region
      _
    $region9: #{tpu_custom_call.1} parent=1 // pred_fallthru
      _
    // Predicated region
    $region10: #{tpu_custom_call.1} parent=1 // pred_check
      _
    $region11: #{tpu_custom_call.1} parent=1 // pred_check_branch
      %23 = sbr.rel (0) target = $region13
    $region12: #{tpu_custom_call.1} parent=1 // pred_region
      _
    $region13: #{tpu_custom_call.1} parent=1 // pred_fallthru
      _
    // Predicated region
    $region14: #{tpu_custom_call.1} parent=1 // pred_check
      _
    $region15: #{tpu_custom_call.1} parent=1 // pred_check_branch
      %25 = sbr.rel (0) target = $region17
    $region16: #{tpu_custom_call.1} parent=1 // pred_region
      %s27 = ssub.s32 1024, 1024
      %28 = vsyncadd [#allocation3], %s27
      %s29 = sshll.u32 [#allocation2], 4
      %s30 = int_to_ptr.vmem [resolvable:$true] %s29
      %35 = dma.hbm_to_vmem [thread:$0]  %s3, 1024, %s30, [#allocation3], 256, 256, 16
    $region17: #{tpu_custom_call.1} parent=1 // pred_fallthru
      _
    // Predicated region
    $region18: #{tpu_custom_call.1} parent=1 // pred_check
      _
    $region19: #{tpu_custom_call.1} parent=1 // pred_check_branch
      %37 = sbr.rel (0) target = $region21
    $region20: #{tpu_custom_call.1} parent=1 // pred_region
      _
    $region21: #{tpu_custom_call.1} parent=1 // pred_fallthru
      _
    // Predicated region
    $region22: #{tpu_custom_call.1} parent=1 // pred_check
      _
    $region23: #{tpu_custom_call.1} parent=1 // pred_check_branch
      %39 = sbr.rel (0) target = $region25
    $region24: #{tpu_custom_call.1} parent=1 // pred_region
      _
    $region25: #{tpu_custom_call.1} parent=1 // pred_fallthru
      _
    // Predicated region
    $region26: #{tpu_custom_call.1} parent=1 // pred_check
      _
    $region27: #{tpu_custom_call.1} parent=1 // pred_check_branch
      %41 = sbr.rel (0) target = $region29
    $region28: #{tpu_custom_call.1} parent=1 // pred_region
      _
    $region29: #{tpu_custom_call.1} parent=1 // pred_fallthru
      _
    // Predicated region
    $region30: #{tpu_custom_call.1} parent=1 // pred_check
      _
    $region31: #{tpu_custom_call.1} parent=1 // pred_check_branch
      %43 = sbr.rel (0) target = $region33
    $region32: #{tpu_custom_call.1} parent=1 // pred_region
      %44 = dma.done [#allocation3], 1024
    $region33: #{tpu_custom_call.1} parent=1 // pred_fallthru
      _
    %v45 = vld [vmem:[%s0] sm:$0xff]
    %v46 = vld [vmem:[%s1] sm:$0xff]
    %v47 = vlaneseq
    %v48 = vand.u32 %v47, 127
    %49 = vset.pattern.permute.xlu0 0
    %50 = vperm.xlu0 %49, %v46
    %v51 = vpop.permute.xlu0 %50
    %vm52 = vcmp.eq.s32.totalorder %v51, %v48
    %v53 = vsel %vm52, 1, 0
    %v54 = vcvt.s32.f32 %v53
    %v55 = vld [vmem:[#allocation2 + $0x8] sm:$0xff]
    %v56 = vld [vmem:[#allocation2 + $0x18] sm:$0xff]
    %v57 = vld [vmem:[#allocation2 + $0x28] sm:$0xff]
    %v58 = vld [vmem:[#allocation2 + $0x38] sm:$0xff]
    %v59 = vld [vmem:[%s4 + $0x4] sm:$0x7]
    %vm60 = vcmask 23552
    %v62 = vsel %vm60, %v54, 0
    %vm64 = vcmask 1042432
    %v66 = vsel %vm64, %v59, 0
    %68 = vmatprep.subr.mxu0 0.0
    %69 = vmatpush1.msra.mxu0 %v66
    %70 = vmatprep.subr.mxu0 0.0
    %71 = vmatpush1.msra.mxu0 0.0
    %72 = vmatprep.subr.mxu0 0.0
    %73 = vmatpush1.msra.mxu0 0.0
    %74 = vmatprep.subr.mxu0 0.0
    %75 = vmatpush1.msra.mxu0 0.0
    %76 = vmatprep.subr.mxu0 0.0
    %77 = vmatpush1.msra.mxu0 0.0
    %78 = vmatprep.subr.mxu0 0.0
    %79 = vmatpush1.msra.mxu0 0.0
    %80 = vmatprep.subr.mxu0 0.0
    %81 = vmatpush1.msra.mxu0 0.0
    %82 = vmatprep.subr.mxu0 0.0
    %83 = vmatpush1.msra.mxu0 0.0
    %84 = vmatprep.subr.mxu0 0.0
    %85 = vmatpush1.msra.mxu0 0.0
    %86 = vmatprep.subr.mxu0 0.0
    %87 = vmatpush1.msra.mxu0 0.0
    %88 = vmatprep.subr.mxu0 0.0
    %89 = vmatpush1.msra.mxu0 0.0
    %90 = vmatprep.subr.mxu0 0.0
    %91 = vmatpush1.msra.mxu0 0.0
    %92 = vmatprep.subr.mxu0 0.0
    %93 = vmatpush1.msra.mxu0 0.0
    %94 = vmatprep.subr.mxu0 0.0
    %95 = vmatpush1.msra.mxu0 0.0
    %96 = vmatprep.subr.mxu0 0.0
    %97 = vmatpush1.msra.mxu0 0.0
    %98 = vmatprep.subr.mxu0 0.0
    %99 = vmatpush1.msra.mxu0 0.0
    %100 = vmatprep.subr.mxu0 0.0
    %101 = vmatpush1.msra.mxu0 0.0
    %102 = vmatprep.subr.mxu0 0.0
    %103 = vmatpush1.msra.mxu0 0.0
    %104 = vmatprep.subr.mxu0 0.0
    %105 = vmatpush1.msra.mxu0 0.0
    %106 = vmatprep.subr.mxu0 0.0
    %107 = vmatpush1.msra.mxu0 0.0
    %108 = vmatprep.subr.mxu0 0.0
    %109 = vmatpush1.msra.mxu0 0.0
    %110 = vmatprep.subr.mxu0 0.0
    %111 = vmatpush1.msra.mxu0 0.0
    %112 = vmatprep.subr.mxu0 0.0
    %113 = vmatpush1.msra.mxu0 0.0
    %114 = vmatprep.subr.mxu0 0.0
    %115 = vmatpush1.msra.mxu0 0.0
    %116 = vmatprep.subr.mxu0 0.0
    %117 = vmatpush1.msra.mxu0 0.0
    %118 = vmatprep.subr.mxu0 0.0
    %119 = vmatpush1.msra.mxu0 0.0
    %120 = vmatprep.subr.mxu0 0.0
    %121 = vmatpush1.msra.mxu0 0.0
    %122 = vmatprep.subr.mxu0 0.0
    %123 = vmatpush1.msra.mxu0 0.0
    %124 = vmatprep.subr.mxu0 0.0
    %125 = vmatpush1.msra.mxu0 0.0
    %126 = vmatprep.subr.mxu0 0.0
    %127 = vmatpush1.msra.mxu0 0.0
    %128 = vmatprep.subr.mxu0 0.0
    %129 = vmatpush1.msra.mxu0 0.0
    %130 = vmatprep.subr.mxu0 0.0
    %131 = vmatpush1.msra.mxu0 0.0
    %132 = vmatprep.mubr.f32.mxu0 0.0
    %133 = vmatmul.mubr.f32.gmra.mrb[0].mxu0 %v62
    %v134 = vpop.f32.mrb[0].mxu0
    %v135 = vadd.f32 0.0, %v134
    %v136 = vpop.f32.mrb[0].mxu0
    %137 = vdwg.mxu0
    %vm138 = vcmask 261120
    %v140 = vsel %vm138, %v45, 0
    %142 = vmatprep.subr.mxu0 0.0
    %143 = vmatpush1.msra.mxu0 %v55
    %144 = vmatprep.subr.mxu0 0.0
    %145 = vmatpush1.msra.mxu0 %v56
    %146 = vmatprep.subr.mxu0 0.0
    %147 = vmatpush1.msra.mxu0 %v57
    %148 = vmatprep.subr.mxu0 0.0
    %149 = vmatpush1.msra.mxu0 %v58
    %150 = vmatprep.subr.mxu0 0.0
    %151 = vmatpush1.msra.mxu0 0.0
    %152 = vmatprep.subr.mxu0 0.0
    %153 = vmatpush1.msra.mxu0 0.0
    %154 = vmatprep.subr.mxu0 0.0
    %155 = vmatpush1.msra.mxu0 0.0
    %156 = vmatprep.subr.mxu0 0.0
    %157 = vmatpush1.msra.mxu0 0.0
    %158 = vmatprep.subr.mxu0 0.0
    %159 = vmatpush1.msra.mxu0 0.0
    %160 = vmatprep.subr.mxu0 0.0
    %161 = vmatpush1.msra.mxu0 0.0
    %162 = vmatprep.subr.mxu0 0.0
    %163 = vmatpush1.msra.mxu0 0.0
    %164 = vmatprep.subr.mxu0 0.0
    %165 = vmatpush1.msra.mxu0 0.0
    %166 = vmatprep.subr.mxu0 0.0
    %167 = vmatpush1.msra.mxu0 0.0
    %168 = vmatprep.subr.mxu0 0.0
    %169 = vmatpush1.msra.mxu0 0.0
    %170 = vmatprep.subr.mxu0 0.0
    %171 = vmatpush1.msra.mxu0 0.0
    %172 = vmatprep.subr.mxu0 0.0
    %173 = vmatpush1.msra.mxu0 0.0
    %174 = vmatprep.subr.mxu0 0.0
    %175 = vmatpush1.msra.mxu0 0.0
    %176 = vmatprep.subr.mxu0 0.0
    %177 = vmatpush1.msra.mxu0 0.0
    %178 = vmatprep.subr.mxu0 0.0
    %179 = vmatpush1.msra.mxu0 0.0
    %180 = vmatprep.subr.mxu0 0.0
    %181 = vmatpush1.msra.mxu0 0.0
    %182 = vmatprep.subr.mxu0 0.0
    %183 = vmatpush1.msra.mxu0 0.0
    %184 = vmatprep.subr.mxu0 0.0
    %185 = vmatpush1.msra.mxu0 0.0
    %186 = vmatprep.subr.mxu0 0.0
    %187 = vmatpush1.msra.mxu0 0.0
    %188 = vmatprep.subr.mxu0 0.0
    %189 = vmatpush1.msra.mxu0 0.0
    %190 = vmatprep.subr.mxu0 0.0
    %191 = vmatpush1.msra.mxu0 0.0
    %192 = vmatprep.subr.mxu0 0.0
    %193 = vmatpush1.msra.mxu0 0.0
    %194 = vmatprep.subr.mxu0 0.0
    %195 = vmatpush1.msra.mxu0 0.0
    %196 = vmatprep.subr.mxu0 0.0
    %197 = vmatpush1.msra.mxu0 0.0
    %198 = vmatprep.subr.mxu0 0.0
    %199 = vmatpush1.msra.mxu0 0.0
    %200 = vmatprep.subr.mxu0 0.0
    %201 = vmatpush1.msra.mxu0 0.0
    %202 = vmatprep.subr.mxu0 0.0
    %203 = vmatpush1.msra.mxu0 0.0
    %204 = vmatprep.subr.mxu0 0.0
    %205 = vmatpush1.msra.mxu0 0.0
    %206 = vmatprep.mubr.f32.mxu0 0.0
    %207 = vmatmul.mubr.f32.gmra.mrb[0].mxu0 %v140
    %v208 = vpop.f32.mrb[0].mxu0
    %v209 = vadd.f32 %v135, %v208
    %v210 = vpop.f32.mrb[0].mxu0
    %211 = vdwg.mxu0
    %v212 = vld [vmem:[%s5 + $0x1] sm:$0x1]
    %v214 = vlaneseq
    %v215 = vshrl.u32 %v214, 7
    %v216 = vsub.s32 0, %v215
    %v217 = vrot.slane %v212, %v216
    %v219 = vadd.f32 %v209, %v217
    %220 = vst [vmem:[#allocation8] sm:$0xff] %v219
    %v221 = vld [vmem:[#allocation2] sm:$0xff]
    %v222 = vld [vmem:[#allocation2 + $0x10] sm:$0xff]
    %v223 = vld [vmem:[#allocation2 + $0x20] sm:$0xff]
    %v224 = vld [vmem:[#allocation2 + $0x30] sm:$0xff]
    %v225 = vld [vmem:[%s4] sm:$0x7]
    %v227 = vsel %vm64, %v225, 0
    %229 = vmatprep.subr.mxu0 0.0
    %230 = vmatpush1.msra.mxu0 %v227
    %231 = vmatprep.subr.mxu0 0.0
    %232 = vmatpush1.msra.mxu0 0.0
    %233 = vmatprep.subr.mxu0 0.0
    %234 = vmatpush1.msra.mxu0 0.0
    %235 = vmatprep.subr.mxu0 0.0
    %236 = vmatpush1.msra.mxu0 0.0
    %237 = vmatprep.subr.mxu0 0.0
    %238 = vmatpush1.msra.mxu0 0.0
    %239 = vmatprep.subr.mxu0 0.0
    %240 = vmatpush1.msra.mxu0 0.0
    %241 = vmatprep.subr.mxu0 0.0
    %242 = vmatpush1.msra.mxu0 0.0
    %243 = vmatprep.subr.mxu0 0.0
    %244 = vmatpush1.msra.mxu0 0.0
    %245 = vmatprep.subr.mxu0 0.0
    %246 = vmatpush1.msra.mxu0 0.0
    %247 = vmatprep.subr.mxu0 0.0
    %248 = vmatpush1.msra.mxu0 0.0
    %249 = vmatprep.subr.mxu0 0.0
    %250 = vmatpush1.msra.mxu0 0.0
    %251 = vmatprep.subr.mxu0 0.0
    %252 = vmatpush1.msra.mxu0 0.0
    %253 = vmatprep.subr.mxu0 0.0
    %254 = vmatpush1.msra.mxu0 0.0
    %255 = vmatprep.subr.mxu0 0.0
    %256 = vmatpush1.msra.mxu0 0.0
    %257 = vmatprep.subr.mxu0 0.0
    %258 = vmatpush1.msra.mxu0 0.0
    %259 = vmatprep.subr.mxu0 0.0
    %260 = vmatpush1.msra.mxu0 0.0
    %261 = vmatprep.subr.mxu0 0.0
    %262 = vmatpush1.msra.mxu0 0.0
    %263 = vmatprep.subr.mxu0 0.0
    %264 = vmatpush1.msra.mxu0 0.0
    %265 = vmatprep.subr.mxu0 0.0
    %266 = vmatpush1.msra.mxu0 0.0
    %267 = vmatprep.subr.mxu0 0.0
    %268 = vmatpush1.msra.mxu0 0.0
    %269 = vmatprep.subr.mxu0 0.0
    %270 = vmatpush1.msra.mxu0 0.0
    %271 = vmatprep.subr.mxu0 0.0
    %272 = vmatpush1.msra.mxu0 0.0
    %273 = vmatprep.subr.mxu0 0.0
    %274 = vmatpush1.msra.mxu0 0.0
    %275 = vmatprep.subr.mxu0 0.0
    %276 = vmatpush1.msra.mxu0 0.0
    %277 = vmatprep.subr.mxu0 0.0
    %278 = vmatpush1.msra.mxu0 0.0
    %279 = vmatprep.subr.mxu0 0.0
    %280 = vmatpush1.msra.mxu0 0.0
    %281 = vmatprep.subr.mxu0 0.0
    %282 = vmatpush1.msra.mxu0 0.0
    %283 = vmatprep.subr.mxu0 0.0
    %284 = vmatpush1.msra.mxu0 0.0
    %285 = vmatprep.subr.mxu0 0.0
    %286 = vmatpush1.msra.mxu0 0.0
    %287 = vmatprep.subr.mxu0 0.0
    %288 = vmatpush1.msra.mxu0 0.0
    %289 = vmatprep.subr.mxu0 0.0
    %290 = vmatpush1.msra.mxu0 0.0
    %291 = vmatprep.subr.mxu0 0.0
    %292 = vmatpush1.msra.mxu0 0.0
    %293 = vmatprep.mubr.f32.mxu0 0.0
    %294 = vmatmul.mubr.f32.gmra.mrb[0].mxu0 %v62
    %v295 = vpop.f32.mrb[0].mxu0
    %v296 = vadd.f32 0.0, %v295
    %v297 = vpop.f32.mrb[0].mxu0
    %298 = vdwg.mxu0
    %299 = vmatprep.subr.mxu0 0.0
    %300 = vmatpush1.msra.mxu0 %v221
    %301 = vmatprep.subr.mxu0 0.0
    %302 = vmatpush1.msra.mxu0 %v222
    %303 = vmatprep.subr.mxu0 0.0
    %304 = vmatpush1.msra.mxu0 %v223
    %305 = vmatprep.subr.mxu0 0.0
    %306 = vmatpush1.msra.mxu0 %v224
    %307 = vmatprep.subr.mxu0 0.0
    %308 = vmatpush1.msra.mxu0 0.0
    %309 = vmatprep.subr.mxu0 0.0
    %310 = vmatpush1.msra.mxu0 0.0
    %311 = vmatprep.subr.mxu0 0.0
    %312 = vmatpush1.msra.mxu0 0.0
    %313 = vmatprep.subr.mxu0 0.0
    %314 = vmatpush1.msra.mxu0 0.0
    %315 = vmatprep.subr.mxu0 0.0
    %316 = vmatpush1.msra.mxu0 0.0
    %317 = vmatprep.subr.mxu0 0.0
    %318 = vmatpush1.msra.mxu0 0.0
    %319 = vmatprep.subr.mxu0 0.0
    %320 = vmatpush1.msra.mxu0 0.0
    %321 = vmatprep.subr.mxu0 0.0
    %322 = vmatpush1.msra.mxu0 0.0
    %323 = vmatprep.subr.mxu0 0.0
    %324 = vmatpush1.msra.mxu0 0.0
    %325 = vmatprep.subr.mxu0 0.0
    %326 = vmatpush1.msra.mxu0 0.0
    %327 = vmatprep.subr.mxu0 0.0
    %328 = vmatpush1.msra.mxu0 0.0
    %329 = vmatprep.subr.mxu0 0.0
    %330 = vmatpush1.msra.mxu0 0.0
    %331 = vmatprep.subr.mxu0 0.0
    %332 = vmatpush1.msra.mxu0 0.0
    %333 = vmatprep.subr.mxu0 0.0
    %334 = vmatpush1.msra.mxu0 0.0
    %335 = vmatprep.subr.mxu0 0.0
    %336 = vmatpush1.msra.mxu0 0.0
    %337 = vmatprep.subr.mxu0 0.0
    %338 = vmatpush1.msra.mxu0 0.0
    %339 = vmatprep.subr.mxu0 0.0
    %340 = vmatpush1.msra.mxu0 0.0
    %341 = vmatprep.subr.mxu0 0.0
    %342 = vmatpush1.msra.mxu0 0.0
    %343 = vmatprep.subr.mxu0 0.0
    %344 = vmatpush1.msra.mxu0 0.0
    %345 = vmatprep.subr.mxu0 0.0
    %346 = vmatpush1.msra.mxu0 0.0
    %347 = vmatprep.subr.mxu0 0.0
    %348 = vmatpush1.msra.mxu0 0.0
    %349 = vmatprep.subr.mxu0 0.0
    %350 = vmatpush1.msra.mxu0 0.0
    %351 = vmatprep.subr.mxu0 0.0
    %352 = vmatpush1.msra.mxu0 0.0
    %353 = vmatprep.subr.mxu0 0.0
    %354 = vmatpush1.msra.mxu0 0.0
    %355 = vmatprep.subr.mxu0 0.0
    %356 = vmatpush1.msra.mxu0 0.0
    %357 = vmatprep.subr.mxu0 0.0
    %358 = vmatpush1.msra.mxu0 0.0
    %359 = vmatprep.subr.mxu0 0.0
    %360 = vmatpush1.msra.mxu0 0.0
    %361 = vmatprep.subr.mxu0 0.0
    %362 = vmatpush1.msra.mxu0 0.0
    %363 = vmatprep.mubr.f32.mxu0 0.0
    %364 = vmatmul.mubr.f32.gmra.mrb[0].mxu0 %v140
    %v365 = vpop.f32.mrb[0].mxu0
    %v366 = vadd.f32 %v296, %v365
    %v367 = vpop.f32.mrb[0].mxu0
    %368 = vdwg.mxu0
    %v369 = vld [vmem:[%s5] sm:$0x1]
    %v371 = vlaneseq
    %v372 = vshrl.u32 %v371, 7
    %v373 = vsub.s32 0, %v372
    %v374 = vrot.slane %v369, %v373
    %v376 = vadd.f32 %v366, %v374
    %377 = vmax.xlane.f32.xlu0 %v376
    %v378 = vpop.xlane.xlu0 %377
    %v379 = vsub.f32 %v376, %v378
    %v380 = vmul.f32 %v379, 1.442695
    %v381 = vpow.pop %v380
    %382 = vadd.xlane.f32.xlu0 %v381
    %v383 = vpop.xlane.xlu0 %382
    %v384 = vrcp.pop %v383
    %v385 = vmul.f32 %v381, %v384
    %v386 = vld [vmem:[%s2] sm:$0xff]
    %v387 = vmul.f32 %v386, 1.442695
    %v388 = vpow.pop %v387
    %390 = vrot.lane.b32.xlu0 %v386, 127
    %v391 = vpop.permute.xlu0 %390
    %v393 = vmul.f32 %v388, %v391
    %394 = vst [vmem:[#allocation5] sm:$0xff] %v385
    %396 = vset.pattern.permute.xlu0 0
    %397 = vperm.xlu0 %396, %v393
    %v398 = vpop.permute.xlu0 %397
    %v400 = vmul.f32 %v398, %v385
    %v401 = vld [vmem:[%s6] sm:$0x1]
    %v403 = vlaneseq
    %v404 = vshrl.u32 %v403, 7
    %v405 = vsub.s32 0, %v404
    %v406 = vrot.slane %v401, %v405
    %v408 = vmul.f32 %v400, %v406
    %409 = vst [vmem:[#allocation6] sm:$0xff] %v408
    // Predicated region
    $region34: #{tpu_custom_call.1} parent=1 // pred_check
      _
    $region35: #{tpu_custom_call.1} parent=1 // pred_check_branch
      %411 = sbr.rel (0) target = $region37
    $region36: #{tpu_custom_call.1} parent=1 // pred_region
      %s413 = ssub.s32 128, 128
      %414 = vsyncadd [#allocation4], %s413
      %s416 = sshll.u32 [#allocation5], 4
      %s417 = int_to_ptr.vmem [resolvable:$true] %s416
      %419 = dma.vmem_to_hbm [thread:$0]  %s417, 128, %s7, [#allocation4]
    $region37: #{tpu_custom_call.1} parent=1 // pred_fallthru
      _
    // Predicated region
    $region38: #{tpu_custom_call.1} parent=1 // pred_check
      _
    $region39: #{tpu_custom_call.1} parent=1 // pred_check_branch
      %421 = sbr.rel (0) target = $region41
    $region40: #{tpu_custom_call.1} parent=1 // pred_region
      %s423 = ssub.s32 128, 128
      %424 = vsyncadd [#allocation7], %s423
      %s426 = sshll.u32 [#allocation6], 4
      %s427 = int_to_ptr.vmem [resolvable:$true] %s426
      %429 = dma.vmem_to_hbm [thread:$0]  %s427, 128, %s8, [#allocation7]
    $region41: #{tpu_custom_call.1} parent=1 // pred_fallthru
      _
    // Predicated region
    $region42: #{tpu_custom_call.1} parent=1 // pred_check
      _
    $region43: #{tpu_custom_call.1} parent=1 // pred_check_branch
      %431 = sbr.rel (0) target = $region45
    $region44: #{tpu_custom_call.1} parent=1 // pred_region
      %s433 = ssub.s32 128, 128
      %434 = vsyncadd [#allocation7], %s433
      %s436 = sshll.u32 [#allocation8], 4
      %s437 = int_to_ptr.vmem [resolvable:$true] %s436
      %439 = dma.vmem_to_hbm [thread:$0]  %s437, 128, %s9, [#allocation7]
    $region45: #{tpu_custom_call.1} parent=1 // pred_fallthru
      _
    // Predicated region
    $region46: #{tpu_custom_call.1} parent=1 // pred_check
      _
    $region47: #{tpu_custom_call.1} parent=1 // pred_check_branch
      %441 = sbr.rel (0) target = $region49
    $region48: #{tpu_custom_call.1} parent=1 // pred_region
      %442 = dma.done [#allocation4], 128
    $region49: #{tpu_custom_call.1} parent=1 // pred_fallthru
      _
    // Predicated region
    $region50: #{tpu_custom_call.1} parent=1 // pred_check
      _
    $region51: #{tpu_custom_call.1} parent=1 // pred_check_branch
      %444 = sbr.rel (0) target = $region53
    $region52: #{tpu_custom_call.1} parent=1 // pred_region
      %445 = dma.done [#allocation7], 128
    $region53: #{tpu_custom_call.1} parent=1 // pred_fallthru
      _
    // Predicated region
    $region54: #{tpu_custom_call.1} parent=1 // pred_check
      _
    $region55: #{tpu_custom_call.1} parent=1 // pred_check_branch
      %447 = sbr.rel (0) target = $region57
    $region56: #{tpu_custom_call.1} parent=1 // pred_region
      %448 = dma.done [#allocation7], 128
    $region57: #{tpu_custom_call.1} parent=1 // pred_fallthru
      _
    %449 = vsyncpa [#allocation3], 1
    %450 = vsyncpa [#allocation4], 1
    %451 = vsyncpa [#allocation7], 1

// kernel: tpu_custom_call.1
$region0: #{tpu_custom_call.1}
  #allocation0 [shape = 'u32[]', space=smem, size = 0x4, offset = 0x4, fixed_abs, tag = 'smem constant byte address 0x4 - core index']
  #allocation1 [shape = 'u32[144,128]{1,0:T(1,128)}', space=vmem, size = 0x12000, scoped, tag = 'internal scratch']
  %s0 = inlined_call_operand.vmem [shape: f32[8,32], index: 0, kind: input, shape index: {}]
  %s1 = inlined_call_operand.vmem [shape: s32[8,1], index: 1, kind: input, shape index: {}]
  %s2 = inlined_call_operand.vmem [shape: f32[8,2], index: 2, kind: input, shape index: {}]
  %s3 = inlined_call_operand.hbm [shape: f32[32,256], index: 3, kind: input, shape index: {}]
  %s4 = inlined_call_operand.vmem [shape: f32[3,256], index: 4, kind: input, shape index: {}]
  %s5 = inlined_call_operand.vmem [shape: f32[1,256], index: 5, kind: input, shape index: {}]
  %s6 = inlined_call_operand.vmem [shape: f32[1,128], index: 6, kind: input, shape index: {}]
  %s7 = inlined_call_operand.hbm [shape: f32[8,128], index: 7, kind: output, shape index: {0}]
  %s8 = inlined_call_operand.hbm [shape: f32[8,128], index: 8, kind: output, shape index: {1}]
  %s9 = inlined_call_operand.hbm [shape: f32[8,128], index: 9, kind: output, shape index: {2}]
  %10 = xla_tuple %s7, %s8, %s9
  %s11 = sld [smem:[#allocation0]]
  $region58: #{tpu_custom_call.1} parent=0
    _
  %s13 = ssub.s32 1, %s11
  %s14 = scalar_select 0, %s13, %s11
  $region1: #{tpu_custom_call.1} parent=0
    #allocation2 [shape = 'u8[32768]{0}', space=vmem, size = 0x8000, scoped, tag = 'input window, operand 3, single buffered']
    #allocation3 [shape = 's32[1]{0}', space=sflag, size = 0x4, scoped, tag = 'scoped memory for tpu_custom_call.1']
    #allocation4 [shape = 's32[1]{0}', space=sflag, size = 0x4, scoped, tag = 'scoped memory for tpu_custom_call.1']
    #allocation5 [shape = 'u8[4096]{0}', space=vmem, size = 0x1000, scoped, tag = 'output window, operand 0, single buffered']
    #allocation6 [shape = 'u8[4096]{0}', space=vmem, size = 0x1000, scoped, tag = 'output window, operand 1, single buffered']
    #allocation7 [shape = 's32[1]{0}', space=sflag, size = 0x4, scoped, tag = 'scoped memory for tpu_custom_call.1']
    #allocation8 [shape = 'u8[4096]{0}', space=vmem, size = 0x1000, scoped, tag = 'output window, operand 2, single buffered']
    %15 = vsyncpa [#allocation3], 0
    %16 = vsyncpa [#allocation4], 0
    %17 = vsyncpa [#allocation7], 0
    // Predicated region
    $region2: #{tpu_custom_call.1} parent=1 // pred_check
      _
    $region3: #{tpu_custom_call.1} parent=1 // pred_check_branch
      %19 = sbr.rel (0) target = $region5
    $region4: #{tpu_custom_call.1} parent=1 // pred_region
      _
    $region5: #{tpu_custom_call.1} parent=1 // pred_fallthru
      _
    // Predicated region
    $region6: #{tpu_custom_call.1} parent=1 // pred_check
      _
    $region7: #{tpu_custom_call.1} parent=1 // pred_check_branch
      %21 = sbr.rel (0) target = $region9
    $region8: #{tpu_custom_call.1} parent=1 // pred_region
      _
    $region9: #{tpu_custom_call.1} parent=1 // pred_fallthru
      _
    // Predicated region
    $region10: #{tpu_custom_call.1} parent=1 // pred_check
      _
    $region11: #{tpu_custom_call.1} parent=1 // pred_check_branch
      %23 = sbr.rel (0) target = $region13
    $region12: #{tpu_custom_call.1} parent=1 // pred_region
      _
    $region13: #{tpu_custom_call.1} parent=1 // pred_fallthru
      _
    // Predicated region
    $region14: #{tpu_custom_call.1} parent=1 // pred_check
      _
    $region15: #{tpu_custom_call.1} parent=1 // pred_check_branch
      %25 = sbr.rel (0) target = $region17
    $region16: #{tpu_custom_call.1} parent=1 // pred_region
      %s27 = ssub.s32 1024, 1024
      %28 = vsyncadd [#allocation3], %s27
      %s29 = sshll.u32 [#allocation2], 4
      %s30 = int_to_ptr.vmem [resolvable:$true] %s29
      %35 = dma.hbm_to_vmem [thread:$0]  %s3, 1024, %s30, [#allocation3], 256, 256, 16
    $region17: #{tpu_custom_call.1} parent=1 // pred_fallthru
      _
    // Predicated region
    $region18: #{tpu_custom_call.1} parent=1 // pred_check
      _
    $region19: #{tpu_custom_call.1} parent=1 // pred_check_branch
      %37 = sbr.rel (0) target = $region21
    $region20: #{tpu_custom_call.1} parent=1 // pred_region
      _
    $region21: #{tpu_custom_call.1} parent=1 // pred_fallthru
      _
    // Predicated region
    $region22: #{tpu_custom_call.1} parent=1 // pred_check
      _
    $region23: #{tpu_custom_call.1} parent=1 // pred_check_branch
      %39 = sbr.rel (0) target = $region25
    $region24: #{tpu_custom_call.1} parent=1 // pred_region
      _
    $region25: #{tpu_custom_call.1} parent=1 // pred_fallthru
      _
    // Predicated region
    $region26: #{tpu_custom_call.1} parent=1 // pred_check
      _
    $region27: #{tpu_custom_call.1} parent=1 // pred_check_branch
      %41 = sbr.rel (0) target = $region29
    $region28: #{tpu_custom_call.1} parent=1 // pred_region
      _
    $region29: #{tpu_custom_call.1} parent=1 // pred_fallthru
      _
    // Predicated region
    $region30: #{tpu_custom_call.1} parent=1 // pred_check
      _
    $region31: #{tpu_custom_call.1} parent=1 // pred_check_branch
      %43 = sbr.rel (0) target = $region33
    $region32: #{tpu_custom_call.1} parent=1 // pred_region
      %44 = dma.done [#allocation3], 1024
    $region33: #{tpu_custom_call.1} parent=1 // pred_fallthru
      _
    %v45 = vld [vmem:[%s0] sm:$0xff]
    %v46 = vld [vmem:[%s1] sm:$0xff]
    %v47 = vlaneseq
    %v48 = vand.u32 %v47, 127
    %49 = vset.pattern.permute.xlu0 0
    %50 = vperm.xlu0 %49, %v46
    %v51 = vpop.permute.xlu0 %50
    %vm52 = vcmp.eq.s32.totalorder %v51, %v48
    %v53 = vsel %vm52, 1, 0
    %v54 = vcvt.s32.f32 %v53
    %v55 = vld [vmem:[#allocation2 + $0x8] sm:$0xff]
    %v56 = vld [vmem:[#allocation2 + $0x18] sm:$0xff]
    %v57 = vld [vmem:[#allocation2 + $0x28] sm:$0xff]
    %v58 = vld [vmem:[#allocation2 + $0x38] sm:$0xff]
    %v59 = vld [vmem:[%s4 + $0x4] sm:$0x7]
    %vm60 = vcmask 23552
    %v62 = vsel %vm60, %v54, 0
    %vm64 = vcmask 1042432
    %v66 = vsel %vm64, %v59, 0
    %68 = vmatprep.subr.mxu0 0.0
    %69 = vmatpush1.msra.mxu0 %v66
    %70 = vmatprep.subr.mxu0 0.0
    %71 = vmatpush1.msra.mxu0 0.0
    %72 = vmatprep.subr.mxu0 0.0
    %73 = vmatpush1.msra.mxu0 0.0
    %74 = vmatprep.subr.mxu0 0.0
    %75 = vmatpush1.msra.mxu0 0.0
    %76 = vmatprep.subr.mxu0 0.0
    %77 = vmatpush1.msra.mxu0 0.0
    %78 = vmatprep.subr.mxu0 0.0
    %79 = vmatpush1.msra.mxu0 0.0
    %80 = vmatprep.subr.mxu0 0.0
    %81 = vmatpush1.msra.mxu0 0.0
    %82 = vmatprep.subr.mxu0 0.0
    %83 = vmatpush1.msra.mxu0 0.0
    %84 = vmatprep.subr.mxu0 0.0
    %85 = vmatpush1.msra.mxu0 0.0
    %86 = vmatprep.subr.mxu0 0.0
    %87 = vmatpush1.msra.mxu0 0.0
    %88 = vmatprep.subr.mxu0 0.0
    %89 = vmatpush1.msra.mxu0 0.0
    %90 = vmatprep.subr.mxu0 0.0
    %91 = vmatpush1.msra.mxu0 0.0
    %92 = vmatprep.subr.mxu0 0.0
    %93 = vmatpush1.msra.mxu0 0.0
    %94 = vmatprep.subr.mxu0 0.0
    %95 = vmatpush1.msra.mxu0 0.0
    %96 = vmatprep.subr.mxu0 0.0
    %97 = vmatpush1.msra.mxu0 0.0
    %98 = vmatprep.subr.mxu0 0.0
    %99 = vmatpush1.msra.mxu0 0.0
    %100 = vmatprep.subr.mxu0 0.0
    %101 = vmatpush1.msra.mxu0 0.0
    %102 = vmatprep.subr.mxu0 0.0
    %103 = vmatpush1.msra.mxu0 0.0
    %104 = vmatprep.subr.mxu0 0.0
    %105 = vmatpush1.msra.mxu0 0.0
    %106 = vmatprep.subr.mxu0 0.0
    %107 = vmatpush1.msra.mxu0 0.0
    %108 = vmatprep.subr.mxu0 0.0
    %109 = vmatpush1.msra.mxu0 0.0
    %110 = vmatprep.subr.mxu0 0.0
    %111 = vmatpush1.msra.mxu0 0.0
    %112 = vmatprep.subr.mxu0 0.0
    %113 = vmatpush1.msra.mxu0 0.0
    %114 = vmatprep.subr.mxu0 0.0
    %115 = vmatpush1.msra.mxu0 0.0
    %116 = vmatprep.subr.mxu0 0.0
    %117 = vmatpush1.msra.mxu0 0.0
    %118 = vmatprep.subr.mxu0 0.0
    %119 = vmatpush1.msra.mxu0 0.0
    %120 = vmatprep.subr.mxu0 0.0
    %121 = vmatpush1.msra.mxu0 0.0
    %122 = vmatprep.subr.mxu0 0.0
    %123 = vmatpush1.msra.mxu0 0.0
    %124 = vmatprep.subr.mxu0 0.0
    %125 = vmatpush1.msra.mxu0 0.0
    %126 = vmatprep.subr.mxu0 0.0
    %127 = vmatpush1.msra.mxu0 0.0
    %128 = vmatprep.subr.mxu0 0.0
    %129 = vmatpush1.msra.mxu0 0.0
    %130 = vmatprep.subr.mxu0 0.0
    %131 = vmatpush1.msra.mxu0 0.0
    %132 = vmatprep.mubr.f32.mxu0 0.0
    %133 = vmatmul.mubr.f32.gmra.mrb[0].mxu0 %v62
    %v134 = vpop.f32.mrb[0].mxu0
    %v135 = vadd.f32 0.0, %v134
    %v136 = vpop.f32.mrb[0].mxu0
    %137 = vdwg.mxu0
    %vm138 = vcmask 261120
    %v140 = vsel %vm138, %v45, 0
    %142 = vmatprep.subr.mxu0 0.0
    %143 = vmatpush1.msra.mxu0 %v55
    %144 = vmatprep.subr.mxu0 0.0
    %145 = vmatpush1.msra.mxu0 %v56
    %146 = vmatprep.subr.mxu0 0.0
    %147 = vmatpush1.msra.mxu0 %v57
    %148 = vmatprep.subr.mxu0 0.0
    %149 = vmatpush1.msra.mxu0 %v58
    %150 = vmatprep.subr.mxu0 0.0
    %151 = vmatpush1.msra.mxu0 0.0
    %152 = vmatprep.subr.mxu0 0.0
    %153 = vmatpush1.msra.mxu0 0.0
    %154 = vmatprep.subr.mxu0 0.0
    %155 = vmatpush1.msra.mxu0 0.0
    %156 = vmatprep.subr.mxu0 0.0
    %157 = vmatpush1.msra.mxu0 0.0
    %158 = vmatprep.subr.mxu0 0.0
    %159 = vmatpush1.msra.mxu0 0.0
    %160 = vmatprep.subr.mxu0 0.0
    %161 = vmatpush1.msra.mxu0 0.0
    %162 = vmatprep.subr.mxu0 0.0
    %163 = vmatpush1.msra.mxu0 0.0
    %164 = vmatprep.subr.mxu0 0.0
    %165 = vmatpush1.msra.mxu0 0.0
    %166 = vmatprep.subr.mxu0 0.0
    %167 = vmatpush1.msra.mxu0 0.0
    %168 = vmatprep.subr.mxu0 0.0
    %169 = vmatpush1.msra.mxu0 0.0
    %170 = vmatprep.subr.mxu0 0.0
    %171 = vmatpush1.msra.mxu0 0.0
    %172 = vmatprep.subr.mxu0 0.0
    %173 = vmatpush1.msra.mxu0 0.0
    %174 = vmatprep.subr.mxu0 0.0
    %175 = vmatpush1.msra.mxu0 0.0
    %176 = vmatprep.subr.mxu0 0.0
    %177 = vmatpush1.msra.mxu0 0.0
    %178 = vmatprep.subr.mxu0 0.0
    %179 = vmatpush1.msra.mxu0 0.0
    %180 = vmatprep.subr.mxu0 0.0
    %181 = vmatpush1.msra.mxu0 0.0
    %182 = vmatprep.subr.mxu0 0.0
    %183 = vmatpush1.msra.mxu0 0.0
    %184 = vmatprep.subr.mxu0 0.0
    %185 = vmatpush1.msra.mxu0 0.0
    %186 = vmatprep.subr.mxu0 0.0
    %187 = vmatpush1.msra.mxu0 0.0
    %188 = vmatprep.subr.mxu0 0.0
    %189 = vmatpush1.msra.mxu0 0.0
    %190 = vmatprep.subr.mxu0 0.0
    %191 = vmatpush1.msra.mxu0 0.0
    %192 = vmatprep.subr.mxu0 0.0
    %193 = vmatpush1.msra.mxu0 0.0
    %194 = vmatprep.subr.mxu0 0.0
    %195 = vmatpush1.msra.mxu0 0.0
    %196 = vmatprep.subr.mxu0 0.0
    %197 = vmatpush1.msra.mxu0 0.0
    %198 = vmatprep.subr.mxu0 0.0
    %199 = vmatpush1.msra.mxu0 0.0
    %200 = vmatprep.subr.mxu0 0.0
    %201 = vmatpush1.msra.mxu0 0.0
    %202 = vmatprep.subr.mxu0 0.0
    %203 = vmatpush1.msra.mxu0 0.0
    %204 = vmatprep.subr.mxu0 0.0
    %205 = vmatpush1.msra.mxu0 0.0
    %206 = vmatprep.mubr.f32.mxu0 0.0
    %207 = vmatmul.mubr.f32.gmra.mrb[0].mxu0 %v140
    %v208 = vpop.f32.mrb[0].mxu0
    %v209 = vadd.f32 %v135, %v208
    %v210 = vpop.f32.mrb[0].mxu0
    %211 = vdwg.mxu0
    %v212 = vld [vmem:[%s5 + $0x1] sm:$0x1]
    %v214 = vlaneseq
    %v215 = vshrl.u32 %v214, 7
    %v216 = vsub.s32 0, %v215
    %v217 = vrot.slane %v212, %v216
    %v219 = vadd.f32 %v209, %v217
    %220 = vst [vmem:[#allocation8] sm:$0xff] %v219
    %v221 = vld [vmem:[#allocation2] sm:$0xff]
    %v222 = vld [vmem:[#allocation2 + $0x10] sm:$0xff]
    %v223 = vld [vmem:[#allocation2 + $0x20] sm:$0xff]
    %v224 = vld [vmem:[#allocation2 + $0x30] sm:$0xff]
    %v225 = vld [vmem:[%s4] sm:$0x7]
    %v227 = vsel %vm64, %v225, 0
    %229 = vmatprep.subr.mxu0 0.0
    %230 = vmatpush1.msra.mxu0 %v227
    %231 = vmatprep.subr.mxu0 0.0
    %232 = vmatpush1.msra.mxu0 0.0
    %233 = vmatprep.subr.mxu0 0.0
    %234 = vmatpush1.msra.mxu0 0.0
    %235 = vmatprep.subr.mxu0 0.0
    %236 = vmatpush1.msra.mxu0 0.0
    %237 = vmatprep.subr.mxu0 0.0
    %238 = vmatpush1.msra.mxu0 0.0
    %239 = vmatprep.subr.mxu0 0.0
    %240 = vmatpush1.msra.mxu0 0.0
    %241 = vmatprep.subr.mxu0 0.0
    %242 = vmatpush1.msra.mxu0 0.0
    %243 = vmatprep.subr.mxu0 0.0
    %244 = vmatpush1.msra.mxu0 0.0
    %245 = vmatprep.subr.mxu0 0.0
    %246 = vmatpush1.msra.mxu0 0.0
    %247 = vmatprep.subr.mxu0 0.0
    %248 = vmatpush1.msra.mxu0 0.0
    %249 = vmatprep.subr.mxu0 0.0
    %250 = vmatpush1.msra.mxu0 0.0
    %251 = vmatprep.subr.mxu0 0.0
    %252 = vmatpush1.msra.mxu0 0.0
    %253 = vmatprep.subr.mxu0 0.0
    %254 = vmatpush1.msra.mxu0 0.0
    %255 = vmatprep.subr.mxu0 0.0
    %256 = vmatpush1.msra.mxu0 0.0
    %257 = vmatprep.subr.mxu0 0.0
    %258 = vmatpush1.msra.mxu0 0.0
    %259 = vmatprep.subr.mxu0 0.0
    %260 = vmatpush1.msra.mxu0 0.0
    %261 = vmatprep.subr.mxu0 0.0
    %262 = vmatpush1.msra.mxu0 0.0
    %263 = vmatprep.subr.mxu0 0.0
    %264 = vmatpush1.msra.mxu0 0.0
    %265 = vmatprep.subr.mxu0 0.0
    %266 = vmatpush1.msra.mxu0 0.0
    %267 = vmatprep.subr.mxu0 0.0
    %268 = vmatpush1.msra.mxu0 0.0
    %269 = vmatprep.subr.mxu0 0.0
    %270 = vmatpush1.msra.mxu0 0.0
    %271 = vmatprep.subr.mxu0 0.0
    %272 = vmatpush1.msra.mxu0 0.0
    %273 = vmatprep.subr.mxu0 0.0
    %274 = vmatpush1.msra.mxu0 0.0
    %275 = vmatprep.subr.mxu0 0.0
    %276 = vmatpush1.msra.mxu0 0.0
    %277 = vmatprep.subr.mxu0 0.0
    %278 = vmatpush1.msra.mxu0 0.0
    %279 = vmatprep.subr.mxu0 0.0
    %280 = vmatpush1.msra.mxu0 0.0
    %281 = vmatprep.subr.mxu0 0.0
    %282 = vmatpush1.msra.mxu0 0.0
    %283 = vmatprep.subr.mxu0 0.0
    %284 = vmatpush1.msra.mxu0 0.0
    %285 = vmatprep.subr.mxu0 0.0
    %286 = vmatpush1.msra.mxu0 0.0
    %287 = vmatprep.subr.mxu0 0.0
    %288 = vmatpush1.msra.mxu0 0.0
    %289 = vmatprep.subr.mxu0 0.0
    %290 = vmatpush1.msra.mxu0 0.0
    %291 = vmatprep.subr.mxu0 0.0
    %292 = vmatpush1.msra.mxu0 0.0
    %293 = vmatprep.mubr.f32.mxu0 0.0
    %294 = vmatmul.mubr.f32.gmra.mrb[0].mxu0 %v62
    %v295 = vpop.f32.mrb[0].mxu0
    %v296 = vadd.f32 0.0, %v295
    %v297 = vpop.f32.mrb[0].mxu0
    %298 = vdwg.mxu0
    %299 = vmatprep.subr.mxu0 0.0
    %300 = vmatpush1.msra.mxu0 %v221
    %301 = vmatprep.subr.mxu0 0.0
    %302 = vmatpush1.msra.mxu0 %v222
    %303 = vmatprep.subr.mxu0 0.0
    %304 = vmatpush1.msra.mxu0 %v223
    %305 = vmatprep.subr.mxu0 0.0
    %306 = vmatpush1.msra.mxu0 %v224
    %307 = vmatprep.subr.mxu0 0.0
    %308 = vmatpush1.msra.mxu0 0.0
    %309 = vmatprep.subr.mxu0 0.0
    %310 = vmatpush1.msra.mxu0 0.0
    %311 = vmatprep.subr.mxu0 0.0
    %312 = vmatpush1.msra.mxu0 0.0
    %313 = vmatprep.subr.mxu0 0.0
    %314 = vmatpush1.msra.mxu0 0.0
    %315 = vmatprep.subr.mxu0 0.0
    %316 = vmatpush1.msra.mxu0 0.0
    %317 = vmatprep.subr.mxu0 0.0
    %318 = vmatpush1.msra.mxu0 0.0
    %319 = vmatprep.subr.mxu0 0.0
    %320 = vmatpush1.msra.mxu0 0.0
    %321 = vmatprep.subr.mxu0 0.0
    %322 = vmatpush1.msra.mxu0 0.0
    %323 = vmatprep.subr.mxu0 0.0
    %324 = vmatpush1.msra.mxu0 0.0
    %325 = vmatprep.subr.mxu0 0.0
    %326 = vmatpush1.msra.mxu0 0.0
    %327 = vmatprep.subr.mxu0 0.0
    %328 = vmatpush1.msra.mxu0 0.0
    %329 = vmatprep.subr.mxu0 0.0
    %330 = vmatpush1.msra.mxu0 0.0
    %331 = vmatprep.subr.mxu0 0.0
    %332 = vmatpush1.msra.mxu0 0.0
    %333 = vmatprep.subr.mxu0 0.0
    %334 = vmatpush1.msra.mxu0 0.0
    %335 = vmatprep.subr.mxu0 0.0
    %336 = vmatpush1.msra.mxu0 0.0
    %337 = vmatprep.subr.mxu0 0.0
    %338 = vmatpush1.msra.mxu0 0.0
    %339 = vmatprep.subr.mxu0 0.0
    %340 = vmatpush1.msra.mxu0 0.0
    %341 = vmatprep.subr.mxu0 0.0
    %342 = vmatpush1.msra.mxu0 0.0
    %343 = vmatprep.subr.mxu0 0.0
    %344 = vmatpush1.msra.mxu0 0.0
    %345 = vmatprep.subr.mxu0 0.0
    %346 = vmatpush1.msra.mxu0 0.0
    %347 = vmatprep.subr.mxu0 0.0
    %348 = vmatpush1.msra.mxu0 0.0
    %349 = vmatprep.subr.mxu0 0.0
    %350 = vmatpush1.msra.mxu0 0.0
    %351 = vmatprep.subr.mxu0 0.0
    %352 = vmatpush1.msra.mxu0 0.0
    %353 = vmatprep.subr.mxu0 0.0
    %354 = vmatpush1.msra.mxu0 0.0
    %355 = vmatprep.subr.mxu0 0.0
    %356 = vmatpush1.msra.mxu0 0.0
    %357 = vmatprep.subr.mxu0 0.0
    %358 = vmatpush1.msra.mxu0 0.0
    %359 = vmatprep.subr.mxu0 0.0
    %360 = vmatpush1.msra.mxu0 0.0
    %361 = vmatprep.subr.mxu0 0.0
    %362 = vmatpush1.msra.mxu0 0.0
    %363 = vmatprep.mubr.f32.mxu0 0.0
    %364 = vmatmul.mubr.f32.gmra.mrb[0].mxu0 %v140
    %v365 = vpop.f32.mrb[0].mxu0
    %v366 = vadd.f32 %v296, %v365
    %v367 = vpop.f32.mrb[0].mxu0
    %368 = vdwg.mxu0
    %v369 = vld [vmem:[%s5] sm:$0x1]
    %v371 = vlaneseq
    %v372 = vshrl.u32 %v371, 7
    %v373 = vsub.s32 0, %v372
    %v374 = vrot.slane %v369, %v373
    %v376 = vadd.f32 %v366, %v374
    %377 = vmax.xlane.f32.xlu0 %v376
    %v378 = vpop.xlane.xlu0 %377
    %v379 = vsub.f32 %v376, %v378
    %v380 = vmul.f32 %v379, 1.442695
    %v381 = vpow.pop %v380
    %382 = vadd.xlane.f32.xlu0 %v381
    %v383 = vpop.xlane.xlu0 %382
    %v384 = vrcp.pop %v383
    %v385 = vmul.f32 %v381, %v384
    %v386 = vld [vmem:[%s2] sm:$0xff]
    %v387 = vmul.f32 %v386, 1.442695
    %v388 = vpow.pop %v387
    %390 = vrot.lane.b32.xlu0 %v386, 127
    %v391 = vpop.permute.xlu0 %390
    %v393 = vmul.f32 %v388, %v391
    %394 = vst [vmem:[#allocation5] sm:$0xff] %v385
    %396 = vset.pattern.permute.xlu0 0
    %397 = vperm.xlu0 %396, %v393
    %v398 = vpop.permute.xlu0 %397
    %v400 = vmul.f32 %v398, %v385
    %v401 = vld [vmem:[%s6] sm:$0x1]
    %v403 = vlaneseq
    %v404 = vshrl.u32 %v403, 7
    %v405 = vsub.s32 0, %v404
    %v406 = vrot.slane %v401, %v405
    %v408 = vmul.f32 %v400, %v406
    %409 = vst [vmem:[#allocation6] sm:$0xff] %v408
    // Predicated region
    $region34: #{tpu_custom_call.1} parent=1 // pred_check
      _
    $region35: #{tpu_custom_call.1} parent=1 // pred_check_branch
      %411 = sbr.rel (0) target = $region37
    $region36: #{tpu_custom_call.1} parent=1 // pred_region
      %s413 = ssub.s32 128, 128
      %414 = vsyncadd [#allocation4], %s413
      %s416 = sshll.u32 [#allocation5], 4
      %s417 = int_to_ptr.vmem [resolvable:$true] %s416
      %419 = dma.vmem_to_hbm [thread:$0]  %s417, 128, %s7, [#allocation4]
    $region37: #{tpu_custom_call.1} parent=1 // pred_fallthru
      _
    // Predicated region
    $region38: #{tpu_custom_call.1} parent=1 // pred_check
      _
    $region39: #{tpu_custom_call.1} parent=1 // pred_check_branch
      %421 = sbr.rel (0) target = $region41
    $region40: #{tpu_custom_call.1} parent=1 // pred_region
      %s423 = ssub.s32 128, 128
      %424 = vsyncadd [#allocation7], %s423
      %s426 = sshll.u32 [#allocation6], 4
      %s427 = int_to_ptr.vmem [resolvable:$true] %s426
      %429 = dma.vmem_to_hbm [thread:$0]  %s427, 128, %s8, [#allocation7]
    $region41: #{tpu_custom_call.1} parent=1 // pred_fallthru
      _
    // Predicated region
    $region42: #{tpu_custom_call.1} parent=1 // pred_check
      _
    $region43: #{tpu_custom_call.1} parent=1 // pred_check_branch
      %431 = sbr.rel (0) target = $region45
    $region44: #{tpu_custom_call.1} parent=1 // pred_region
      %s433 = ssub.s32 128, 128
      %434 = vsyncadd [#allocation7], %s433
      %s436 = sshll.u32 [#allocation8], 4
      %s437 = int_to_ptr.vmem [resolvable:$true] %s436
      %439 = dma.vmem_to_hbm [thread:$0]  %s437, 128, %s9, [#allocation7]
    $region45: #{tpu_custom_call.1} parent=1 // pred_fallthru
      _
    // Predicated region
    $region46: #{tpu_custom_call.1} parent=1 // pred_check
      _
    $region47: #{tpu_custom_call.1} parent=1 // pred_check_branch
      %441 = sbr.rel (0) target = $region49
    $region48: #{tpu_custom_call.1} parent=1 // pred_region
      %442 = dma.done [#allocation4], 128
    $region49: #{tpu_custom_call.1} parent=1 // pred_fallthru
      _
    // Predicated region
    $region50: #{tpu_custom_call.1} parent=1 // pred_check
      _
    $region51: #{tpu_custom_call.1} parent=1 // pred_check_branch
      %444 = sbr.rel (0) target = $region53
    $region52: #{tpu_custom_call.1} parent=1 // pred_region
      %445 = dma.done [#allocation7], 128
    $region53: #{tpu_custom_call.1} parent=1 // pred_fallthru
      _
    // Predicated region
    $region54: #{tpu_custom_call.1} parent=1 // pred_check
      _
    $region55: #{tpu_custom_call.1} parent=1 // pred_check_branch
      %447 = sbr.rel (0) target = $region57
    $region56: #{tpu_custom_call.1} parent=1 // pred_region
      %448 = dma.done [#allocation7], 128
    $region57: #{tpu_custom_call.1} parent=1 // pred_fallthru
      _
    %449 = vsyncpa [#allocation3], 1
    %450 = vsyncpa [#allocation4], 1
    %451 = vsyncpa [#allocation7], 1

</llo_original>
